<compile_context>
chip_gen: v5e
topology: v5e:2x2
jax: 0.10.0
libtpu: 0.0.40
codegen_flags: <defaults>
</compile_context>

<pallas_src>
import jax
import jax.numpy as jnp
from jax.experimental import pallas as pl
from jax.experimental.pallas import tpu as pltpu

EPS = 1e-5
MATMUL_DTYPE = jnp.float32          # set to jnp.bfloat16 on v6e/v7x for 2x MXU rate
VMEM_LIMIT_BYTES = 32 * 1024 * 1024  # <= scoped default on all of v5e/v6e/v7x


# --------------------------------------------------------------------------
# Pass 1: conv1 (3x3, stride s) + shortcut (1x1 proj or identity)
#         + per-image per-channel sum / sum-of-squares for BN1 / BNs.
# --------------------------------------------------------------------------
def _make_pass1_kernel(stride, Ho, Wo, Cin, Cout, use_proj):
    M = Ho * Wo
    P = stride * stride

    def kernel(*refs):
        if use_proj:
            xph_ref, w1_ref, ws_ref, y1_ref, s_ref, st_ref = refs
        else:
            xph_ref, w1_ref, y1_ref, s_ref, st_ref = refs

        # Load each stride-phase plane of the padded input exactly once.
        planes = [xph_ref[p] for p in range(P)]          # each (Hq, Wq, Cin)

        acc = None
        ctap = None
        for ky in range(3):
            for kx in range(3):
                r, c = ky % stride, kx % stride
                a, b = ky // stride, kx // stride
                tap = planes[r * stride + c][a:a + Ho, b:b + Wo, :] \
                    .reshape(M, Cin)
                if ky == 1 and kx == 1:
                    ctap = tap                            # shortcut input
                d = jnp.dot(tap, w1_ref[3 * ky + kx],
                            preferred_element_type=jnp.float32)
                acc = d if acc is None else acc + d       # init from first tap

        y1_ref[...] = acc
        st_ref[0:1, :] = jnp.sum(acc, axis=0, keepdims=True)
        st_ref[1:2, :] = jnp.sum(acc * acc, axis=0, keepdims=True)

        if use_proj:
            s = jnp.dot(ctap, ws_ref[...], preferred_element_type=jnp.float32)
            st_ref[2:3, :] = jnp.sum(s, axis=0, keepdims=True)
            st_ref[3:4, :] = jnp.sum(s * s, axis=0, keepdims=True)
        else:
            s = ctap.astype(jnp.float32)                  # identity (Cin == Cout)
            st_ref[2:4, :] = jnp.zeros((2, Cout), jnp.float32)
        s_ref[...] = s

    return kernel


# --------------------------------------------------------------------------
# Pass 2: BN1 affine + ReLU + conv2 (3x3, stride 1) + sum/sumsq for BN2.
# --------------------------------------------------------------------------
def _make_pass2_kernel(Ho, Wo, Cout):
    M = Ho * Wo

    def kernel(y1_ref, a1_ref, c1_ref, w2_ref, y2_ref, st_ref, pad_ref):
        # BN1 as a single fused multiply-add (affine precomputed), then ReLU.
        h1 = jnp.maximum(y1_ref[...] * a1_ref[...] + c1_ref[...], 0.0)

        # Zero ONLY the 1-pixel halo, then write the interior once.
        zrow = jnp.zeros((1, Wo + 2, Cout), jnp.float32)
        zcol = jnp.zeros((Ho, 1, Cout), jnp.float32)
        pad_ref[0:1, :, :] = zrow
        pad_ref[Ho + 1:Ho + 2, :, :] = zrow
        pad_ref[1:Ho + 1, 0:1, :] = zcol
        pad_ref[1:Ho + 1, Wo + 1:Wo + 2, :] = zcol
        pad_ref[1:Ho + 1, 1:Wo + 1, :] = h1.reshape(Ho, Wo, Cout)

        padded = pad_ref[...]                             # load once, slice in-reg
        acc = None
        for ky in range(3):
            for kx in range(3):
                win = padded[ky:ky + Ho, kx:kx + Wo, :].reshape(M, Cout)
                d = jnp.dot(win.astype(MATMUL_DTYPE), w2_ref[3 * ky + kx],
                            preferred_element_type=jnp.float32)
                acc = d if acc is None else acc + d

        y2_ref[...] = acc
        st_ref[0:1, :] = jnp.sum(acc, axis=0, keepdims=True)
        st_ref[1:2, :] = jnp.sum(acc * acc, axis=0, keepdims=True)

    return kernel


# --------------------------------------------------------------------------
# Pass 3: BN2 affine + BNs affine + residual add + ReLU (pure elementwise).
# --------------------------------------------------------------------------
def _pass3_kernel(y2_ref, s_ref, a2_ref, c2_ref, as_ref, cs_ref, out_ref):
    out_ref[...] = jnp.maximum(
        y2_ref[...] * a2_ref[...] + c2_ref[...]
        + s_ref[...] * as_ref[...] + cs_ref[...], 0.0)


# --------------------------------------------------------------------------
# Wrapper
# --------------------------------------------------------------------------
def resnet_block_forward(x_nchw, params, stride):
    """x_nchw: (N, Cin, H, W) float32, PyTorch NCHW convention."""
    x = jnp.transpose(x_nchw, (0, 2, 3, 1)).astype(jnp.float32)   # NHWC
    N, H, W, Cin = x.shape
    Cout = params['w1'].shape[0]
    use_proj = (stride != 1) or (Cin != Cout)
    s = stride
    Ho = (H - 1) // s + 1
    Wo = (W - 1) // s + 1
    M = Ho * Wo                       # output pixels per image
    Mtot = N * M
    P = s * s
    Hq = Ho + 2 // s                  # phase-plane rows (covers the 3-tap halo)
    Wq = Wo + 2 // s

    # glue: conv zero-padding (pad=1) rounded up so the phase split is exact,
    # then split into s*s stride-phase planes.  This is a pure layout permute
    # of the SAME bytes (no 9x tap duplication); taps are sliced in-kernel.
    xp = jnp.pad(x, ((0, 0), (1, s * Hq - (H + 1)), (1, s * Wq - (W + 1)), (0, 0)))
    xph = (xp.reshape(N, Hq, s, Wq, s, Cin)
             .transpose(2, 4, 0, 1, 3, 5)
             .reshape(P, N, Hq, Wq, Cin)).astype(MATMUL_DTYPE)

    # conv weights: OIHW -> (9, Cin, Cout) / (9, Cout, Cout); proj -> (Cin, Cout)
    w1 = jnp.transpose(params['w1'], (2, 3, 1, 0)).reshape(9, Cin, Cout) \
            .astype(MATMUL_DTYPE)
    w2 = jnp.transpose(params['w2'], (2, 3, 1, 0)).reshape(9, Cout, Cout) \
            .astype(MATMUL_DTYPE)

    cp = pltpu.CompilerParams(dimension_semantics=("parallel",),
                              vmem_limit_bytes=VMEM_LIMIT_BYTES)

    # ---- pass 1 ----------------------------------------------------------
    in_specs = [
        pl.BlockSpec((P, None, Hq, Wq, Cin), lambda n: (0, n, 0, 0, 0)),
        pl.BlockSpec((9, Cin, Cout), lambda n: (0, 0, 0)),
    ]
    args = [xph, w1]
    if use_proj:
        ws = jnp.transpose(params['ws'], (2, 3, 1, 0)).reshape(Cin, Cout) \
                .astype(MATMUL_DTYPE)
        in_specs.append(pl.BlockSpec((Cin, Cout), lambda n: (0, 0)))
        args.append(ws)

    flops1 = 2 * Mtot * Cin * Cout * (9 + (1 if use_proj else 0))
    bytes1 = 4 * (int(xph.size) + int(w1.size) + 2 * N * M * Cout + 4 * N * Cout)
    y1, s_raw, st1 = pl.pallas_call(
        _make_pass1_kernel(s, Ho, Wo, Cin, Cout, use_proj),
        grid=(N,),
        in_specs=in_specs,
        out_specs=(
            pl.BlockSpec((None, M, Cout), lambda n: (n, 0, 0)),
            pl.BlockSpec((None, M, Cout), lambda n: (n, 0, 0)),
            pl.BlockSpec((None, 4, Cout), lambda n: (n, 0, 0)),
        ),
        out_shape=(
            jax.ShapeDtypeStruct((N, M, Cout), jnp.float32),
            jax.ShapeDtypeStruct((N, M, Cout), jnp.float32),
            jax.ShapeDtypeStruct((N, 4, Cout), jnp.float32),
        ),
        compiler_params=cp,
        cost_estimate=pl.CostEstimate(flops=int(flops1), transcendentals=0,
                                      bytes_accessed=int(bytes1)),
    )(*args)

    # tiny O(Cout) BN finalize between passes (biased var, eps=1e-5)
    def bn_affine(s_sum, sq_sum, gamma, beta):
        mu = s_sum / Mtot
        var = sq_sum / Mtot - mu * mu
        a = gamma * jax.lax.rsqrt(var + EPS)
        return a, beta - mu * a

    tot1 = jnp.sum(st1, axis=0)                    # (4, Cout)
    a1, c1 = bn_affine(tot1[0], tot1[1], params['g1'], params['b1'])
    if use_proj:
        a_s, c_s = bn_affine(tot1[2], tot1[3], params['gs'], params['bs'])
    else:
        a_s = jnp.ones((Cout,), jnp.float32)
        c_s = jnp.zeros((Cout,), jnp.float32)

    row = lambda v: v.reshape(1, Cout).astype(jnp.float32)

    # ---- pass 2 ----------------------------------------------------------
    flops2 = 2 * Mtot * 9 * Cout * Cout
    bytes2 = 4 * (2 * N * M * Cout + int(w2.size) + 4 * Cout + 2 * N * Cout)
    y2, st2 = pl.pallas_call(
        _make_pass2_kernel(Ho, Wo, Cout),
        grid=(N,),
        in_specs=[
            pl.BlockSpec((None, M, Cout), lambda n: (n, 0, 0)),
            pl.BlockSpec((1, Cout), lambda n: (0, 0)),
            pl.BlockSpec((1, Cout), lambda n: (0, 0)),
            pl.BlockSpec((9, Cout, Cout), lambda n: (0, 0, 0)),
        ],
        out_specs=(
            pl.BlockSpec((None, M, Cout), lambda n: (n, 0, 0)),
            pl.BlockSpec((None, 2, Cout), lambda n: (n, 0, 0)),
        ),
        out_shape=(
            jax.ShapeDtypeStruct((N, M, Cout), jnp.float32),
            jax.ShapeDtypeStruct((N, 2, Cout), jnp.float32),
        ),
        scratch_shapes=[pltpu.VMEM((Ho + 2, Wo + 2, Cout), jnp.float32)],
        compiler_params=cp,
        cost_estimate=pl.CostEstimate(flops=int(flops2), transcendentals=0,
                                      bytes_accessed=int(bytes2)),
    )(y1, row(a1), row(c1), w2)

    tot2 = jnp.sum(st2, axis=0)
    a2, c2 = bn_affine(tot2[0], tot2[1], params['g2'], params['b2'])

    # ---- pass 3 ----------------------------------------------------------
    flops3 = 6 * Mtot * Cout
    bytes3 = 4 * 3 * N * M * Cout
    out_flat = pl.pallas_call(
        _pass3_kernel,
        grid=(N,),
        in_specs=[
            pl.BlockSpec((None, M, Cout), lambda n: (n, 0, 0)),
            pl.BlockSpec((None, M, Cout), lambda n: (n, 0, 0)),
            pl.BlockSpec((1, Cout), lambda n: (0, 0)),
            pl.BlockSpec((1, Cout), lambda n: (0, 0)),
            pl.BlockSpec((1, Cout), lambda n: (0, 0)),
            pl.BlockSpec((1, Cout), lambda n: (0, 0)),
        ],
        out_specs=pl.BlockSpec((None, M, Cout), lambda n: (n, 0, 0)),
        out_shape=jax.ShapeDtypeStruct((N, M, Cout), jnp.float32),
        compiler_params=cp,
        cost_estimate=pl.CostEstimate(flops=int(flops3), transcendentals=0,
                                      bytes_accessed=int(bytes3)),
    )(y2, s_raw, row(a2), row(c2), row(a_s), row(c_s))

    out = out_flat.reshape(N, Ho, Wo, Cout)
    return jnp.transpose(out, (0, 3, 1, 2))        # back to NCHW


# --------------------------------------------------------------------------
# Test harness
# --------------------------------------------------------------------------
def make_params(key, in_ch, out_ch, use_proj):
    ks = jax.random.split(key, 9)
    p = {
        'w1': jax.random.normal(ks[0], (out_ch, in_ch, 3, 3), jnp.float32) * 0.1,
        'g1': 1.0 + 0.1 * jax.random.normal(ks[1], (out_ch,), jnp.float32),
        'b1': 0.1 * jax.random.normal(ks[2], (out_ch,), jnp.float32),
        'w2': jax.random.normal(ks[3], (out_ch, out_ch, 3, 3), jnp.float32) * 0.1,
        'g2': 1.0 + 0.1 * jax.random.normal(ks[4], (out_ch,), jnp.float32),
        'b2': 0.1 * jax.random.normal(ks[5], (out_ch,), jnp.float32),
    }
    if use_proj:
        p['ws'] = jax.random.normal(ks[6], (out_ch, in_ch, 1, 1), jnp.float32) * 0.1
        p['gs'] = 1.0 + 0.1 * jax.random.normal(ks[7], (out_ch,), jnp.float32)
        p['bs'] = 0.1 * jax.random.normal(ks[8], (out_ch,), jnp.float32)
    return p


def ref_forward(x, p, stride):
    """Pure-JAX reference mirroring the PyTorch module (training-mode BN)."""
    def conv(x, w, s, pad):
        return jax.lax.conv_general_dilated(
            x, w, window_strides=(s, s), padding=[(pad, pad), (pad, pad)],
            dimension_numbers=('NCHW', 'OIHW', 'NCHW'),
            precision=jax.lax.Precision.HIGHEST)

    def bn(y, g, b):
        mu = jnp.mean(y, axis=(0, 2, 3), keepdims=True)
        var = jnp.mean((y - mu) ** 2, axis=(0, 2, 3), keepdims=True)
        return ((y - mu) / jnp.sqrt(var + EPS)) * g.reshape(1, -1, 1, 1) \
               + b.reshape(1, -1, 1, 1)

    Cin, Cout = x.shape[1], p['w1'].shape[0]
    use_proj = (stride != 1) or (Cin != Cout)
    out = jax.nn.relu(bn(conv(x, p['w1'], stride, 1), p['g1'], p['b1']))
    out = bn(conv(out, p['w2'], 1, 1), p['g2'], p['b2'])
    sc = bn(conv(x, p['ws'], stride, 0), p['gs'], p['bs']) if use_proj else x
    return jax.nn.relu(out + sc)


if __name__ == "__main__":
    key = jax.random.PRNGKey(0)
    kx_, kp1, kp2 = jax.random.split(key, 3)
    x = jax.random.normal(kx_, (2, 4, 16, 16), jnp.float32)

    # Case 1: projection shortcut (in=4 -> out=8, stride=2)
    p1 = make_params(kp1, 4, 8, use_proj=True)
    y1 = jax.block_until_ready(resnet_block_forward(x, p1, stride=2))
    r1 = ref_forward(x, p1, 2)
    assert y1.shape == (2, 8, 8, 8), y1.shape
    assert jnp.allclose(y1, r1, atol=1e-2, rtol=1e-2), \
        float(jnp.max(jnp.abs(y1 - r1)))

    # Case 2: identity shortcut (in=out=4, stride=1)
    p2 = make_params(kp2, 4, 4, use_proj=False)
    y2 = jax.block_until_ready(resnet_block_forward(x, p2, stride=1))
    r2 = ref_forward(x, p2, 1)
    assert y2.shape == (2, 4, 16, 16), y2.shape
    assert jnp.allclose(y2, r2, atol=1e-2, rtol=1e-2), \
        float(jnp.max(jnp.abs(y2 - r2)))

    print("KERNEL_OK")
</pallas_src>

<mosaic_0001>
module attributes {stable_mosaic.version = 11 : i64} {
  func.func @kernel(%arg0: i32, %arg1: memref<4x1x9x9x4xf32, #tpu.memory_space<vmem>>, %arg2: memref<9x4x8xf32, #tpu.memory_space<vmem>>, %arg3: memref<4x8xf32, #tpu.memory_space<vmem>>, %arg4: memref<1x64x8xf32, #tpu.memory_space<vmem>>, %arg5: memref<1x64x8xf32, #tpu.memory_space<vmem>>, %arg6: memref<1x4x8xf32, #tpu.memory_space<vmem>>) attributes {dimension_semantics = [#tpu.dimension_semantics<parallel>], iteration_bounds = array<i64: 2>, scalar_prefetch = 0 : i64, scratch_operands = 0 : i64, tpu.core_type = #tpu.core_type<tc>, window_params = [{transform_indices = @transform_0, window_bounds = array<i64: 4, 1, 9, 9, 4>}, {pipeline_mode = #tpu.pipeline_mode<synchronous>, transform_indices = @transform_1, window_bounds = array<i64: 9, 4, 8>}, {pipeline_mode = #tpu.pipeline_mode<synchronous>, transform_indices = @transform_2, window_bounds = array<i64: 4, 8>}, {transform_indices = @transform_3, window_bounds = array<i64: 1, 64, 8>}, {transform_indices = @transform_4, window_bounds = array<i64: 1, 64, 8>}, {transform_indices = @transform_5, window_bounds = array<i64: 1, 4, 8>}]} {
    %c0 = arith.constant 0 : index
    %c0_0 = arith.constant 0 : index
    %c0_1 = arith.constant 0 : index
    %c0_2 = arith.constant 0 : index
    %c0_3 = arith.constant 0 : index
    %0 = vector.load %arg1[%c0, %c0_0, %c0_1, %c0_2, %c0_3] : memref<4x1x9x9x4xf32, #tpu.memory_space<vmem>>, vector<1x1x9x9x4xf32>
    %1 = vector.shape_cast %0 : vector<1x1x9x9x4xf32> to vector<9x9x4xf32>
    %c1 = arith.constant 1 : index
    %c0_4 = arith.constant 0 : index
    %c0_5 = arith.constant 0 : index
    %c0_6 = arith.constant 0 : index
    %c0_7 = arith.constant 0 : index
    %2 = vector.load %arg1[%c1, %c0_4, %c0_5, %c0_6, %c0_7] : memref<4x1x9x9x4xf32, #tpu.memory_space<vmem>>, vector<1x1x9x9x4xf32>
    %3 = vector.shape_cast %2 : vector<1x1x9x9x4xf32> to vector<9x9x4xf32>
    %c2 = arith.constant 2 : index
    %c0_8 = arith.constant 0 : index
    %c0_9 = arith.constant 0 : index
    %c0_10 = arith.constant 0 : index
    %c0_11 = arith.constant 0 : index
    %4 = vector.load %arg1[%c2, %c0_8, %c0_9, %c0_10, %c0_11] : memref<4x1x9x9x4xf32, #tpu.memory_space<vmem>>, vector<1x1x9x9x4xf32>
    %5 = vector.shape_cast %4 : vector<1x1x9x9x4xf32> to vector<9x9x4xf32>
    %c3 = arith.constant 3 : index
    %c0_12 = arith.constant 0 : index
    %c0_13 = arith.constant 0 : index
    %c0_14 = arith.constant 0 : index
    %c0_15 = arith.constant 0 : index
    %6 = vector.load %arg1[%c3, %c0_12, %c0_13, %c0_14, %c0_15] : memref<4x1x9x9x4xf32, #tpu.memory_space<vmem>>, vector<1x1x9x9x4xf32>
    %7 = vector.shape_cast %6 : vector<1x1x9x9x4xf32> to vector<9x9x4xf32>
    %8 = vector.extract_strided_slice %1 {offsets = [0, 0, 0], sizes = [8, 8, 4], strides = [1, 1, 1]} : vector<9x9x4xf32> to vector<8x8x4xf32>
    %9 = vector.shape_cast %8 : vector<8x8x4xf32> to vector<64x4xf32>
    %c0_16 = arith.constant 0 : index
    %c0_17 = arith.constant 0 : index
    %c0_18 = arith.constant 0 : index
    %10 = vector.load %arg2[%c0_16, %c0_17, %c0_18] : memref<9x4x8xf32, #tpu.memory_space<vmem>>, vector<1x4x8xf32>
    %11 = vector.shape_cast %10 : vector<1x4x8xf32> to vector<4x8xf32>
    %cst = arith.constant dense<0.000000e+00> : vector<64x8xf32>
    %12 = tpu.matmul %9, %11, %cst {dimension_numbers = #tpu.dot_dimension_numbers<[1], [0], [0], [1], [0, 0, 1, 1], [], []>} : vector<64x4xf32>, vector<4x8xf32>, vector<64x8xf32> -> vector<64x8xf32>
    %13 = vector.extract_strided_slice %3 {offsets = [0, 0, 0], sizes = [8, 8, 4], strides = [1, 1, 1]} : vector<9x9x4xf32> to vector<8x8x4xf32>
    %14 = vector.shape_cast %13 : vector<8x8x4xf32> to vector<64x4xf32>
    %c1_19 = arith.constant 1 : index
    %c0_20 = arith.constant 0 : index
    %c0_21 = arith.constant 0 : index
    %15 = vector.load %arg2[%c1_19, %c0_20, %c0_21] : memref<9x4x8xf32, #tpu.memory_space<vmem>>, vector<1x4x8xf32>
    %16 = vector.shape_cast %15 : vector<1x4x8xf32> to vector<4x8xf32>
    %cst_22 = arith.constant dense<0.000000e+00> : vector<64x8xf32>
    %17 = tpu.matmul %14, %16, %cst_22 {dimension_numbers = #tpu.dot_dimension_numbers<[1], [0], [0], [1], [0, 0, 1, 1], [], []>} : vector<64x4xf32>, vector<4x8xf32>, vector<64x8xf32> -> vector<64x8xf32>
    %18 = arith.addf %12, %17 : vector<64x8xf32>
    %19 = vector.extract_strided_slice %1 {offsets = [0, 1, 0], sizes = [8, 8, 4], strides = [1, 1, 1]} : vector<9x9x4xf32> to vector<8x8x4xf32>
    %20 = vector.shape_cast %19 : vector<8x8x4xf32> to vector<64x4xf32>
    %c2_23 = arith.constant 2 : index
    %c0_24 = arith.constant 0 : index
    %c0_25 = arith.constant 0 : index
    %21 = vector.load %arg2[%c2_23, %c0_24, %c0_25] : memref<9x4x8xf32, #tpu.memory_space<vmem>>, vector<1x4x8xf32>
    %22 = vector.shape_cast %21 : vector<1x4x8xf32> to vector<4x8xf32>
    %cst_26 = arith.constant dense<0.000000e+00> : vector<64x8xf32>
    %23 = tpu.matmul %20, %22, %cst_26 {dimension_numbers = #tpu.dot_dimension_numbers<[1], [0], [0], [1], [0, 0, 1, 1], [], []>} : vector<64x4xf32>, vector<4x8xf32>, vector<64x8xf32> -> vector<64x8xf32>
    %24 = arith.addf %18, %23 : vector<64x8xf32>
    %25 = vector.extract_strided_slice %5 {offsets = [0, 0, 0], sizes = [8, 8, 4], strides = [1, 1, 1]} : vector<9x9x4xf32> to vector<8x8x4xf32>
    %26 = vector.shape_cast %25 : vector<8x8x4xf32> to vector<64x4xf32>
    %c3_27 = arith.constant 3 : index
    %c0_28 = arith.constant 0 : index
    %c0_29 = arith.constant 0 : index
    %27 = vector.load %arg2[%c3_27, %c0_28, %c0_29] : memref<9x4x8xf32, #tpu.memory_space<vmem>>, vector<1x4x8xf32>
    %28 = vector.shape_cast %27 : vector<1x4x8xf32> to vector<4x8xf32>
    %cst_30 = arith.constant dense<0.000000e+00> : vector<64x8xf32>
    %29 = tpu.matmul %26, %28, %cst_30 {dimension_numbers = #tpu.dot_dimension_numbers<[1], [0], [0], [1], [0, 0, 1, 1], [], []>} : vector<64x4xf32>, vector<4x8xf32>, vector<64x8xf32> -> vector<64x8xf32>
    %30 = arith.addf %24, %29 : vector<64x8xf32>
    %31 = vector.extract_strided_slice %7 {offsets = [0, 0, 0], sizes = [8, 8, 4], strides = [1, 1, 1]} : vector<9x9x4xf32> to vector<8x8x4xf32>
    %32 = vector.shape_cast %31 : vector<8x8x4xf32> to vector<64x4xf32>
    %c4 = arith.constant 4 : index
    %c0_31 = arith.constant 0 : index
    %c0_32 = arith.constant 0 : index
    %33 = vector.load %arg2[%c4, %c0_31, %c0_32] : memref<9x4x8xf32, #tpu.memory_space<vmem>>, vector<1x4x8xf32>
    %34 = vector.shape_cast %33 : vector<1x4x8xf32> to vector<4x8xf32>
    %cst_33 = arith.constant dense<0.000000e+00> : vector<64x8xf32>
    %35 = tpu.matmul %32, %34, %cst_33 {dimension_numbers = #tpu.dot_dimension_numbers<[1], [0], [0], [1], [0, 0, 1, 1], [], []>} : vector<64x4xf32>, vector<4x8xf32>, vector<64x8xf32> -> vector<64x8xf32>
    %36 = arith.addf %30, %35 : vector<64x8xf32>
    %37 = vector.extract_strided_slice %5 {offsets = [0, 1, 0], sizes = [8, 8, 4], strides = [1, 1, 1]} : vector<9x9x4xf32> to vector<8x8x4xf32>
    %38 = vector.shape_cast %37 : vector<8x8x4xf32> to vector<64x4xf32>
    %c5 = arith.constant 5 : index
    %c0_34 = arith.constant 0 : index
    %c0_35 = arith.constant 0 : index
    %39 = vector.load %arg2[%c5, %c0_34, %c0_35] : memref<9x4x8xf32, #tpu.memory_space<vmem>>, vector<1x4x8xf32>
    %40 = vector.shape_cast %39 : vector<1x4x8xf32> to vector<4x8xf32>
    %cst_36 = arith.constant dense<0.000000e+00> : vector<64x8xf32>
    %41 = tpu.matmul %38, %40, %cst_36 {dimension_numbers = #tpu.dot_dimension_numbers<[1], [0], [0], [1], [0, 0, 1, 1], [], []>} : vector<64x4xf32>, vector<4x8xf32>, vector<64x8xf32> -> vector<64x8xf32>
    %42 = arith.addf %36, %41 : vector<64x8xf32>
    %43 = vector.extract_strided_slice %1 {offsets = [1, 0, 0], sizes = [8, 8, 4], strides = [1, 1, 1]} : vector<9x9x4xf32> to vector<8x8x4xf32>
    %44 = vector.shape_cast %43 : vector<8x8x4xf32> to vector<64x4xf32>
    %c6 = arith.constant 6 : index
    %c0_37 = arith.constant 0 : index
    %c0_38 = arith.constant 0 : index
    %45 = vector.load %arg2[%c6, %c0_37, %c0_38] : memref<9x4x8xf32, #tpu.memory_space<vmem>>, vector<1x4x8xf32>
    %46 = vector.shape_cast %45 : vector<1x4x8xf32> to vector<4x8xf32>
    %cst_39 = arith.constant dense<0.000000e+00> : vector<64x8xf32>
    %47 = tpu.matmul %44, %46, %cst_39 {dimension_numbers = #tpu.dot_dimension_numbers<[1], [0], [0], [1], [0, 0, 1, 1], [], []>} : vector<64x4xf32>, vector<4x8xf32>, vector<64x8xf32> -> vector<64x8xf32>
    %48 = arith.addf %42, %47 : vector<64x8xf32>
    %49 = vector.extract_strided_slice %3 {offsets = [1, 0, 0], sizes = [8, 8, 4], strides = [1, 1, 1]} : vector<9x9x4xf32> to vector<8x8x4xf32>
    %50 = vector.shape_cast %49 : vector<8x8x4xf32> to vector<64x4xf32>
    %c7 = arith.constant 7 : index
    %c0_40 = arith.constant 0 : index
    %c0_41 = arith.constant 0 : index
    %51 = vector.load %arg2[%c7, %c0_40, %c0_41] : memref<9x4x8xf32, #tpu.memory_space<vmem>>, vector<1x4x8xf32>
    %52 = vector.shape_cast %51 : vector<1x4x8xf32> to vector<4x8xf32>
    %cst_42 = arith.constant dense<0.000000e+00> : vector<64x8xf32>
    %53 = tpu.matmul %50, %52, %cst_42 {dimension_numbers = #tpu.dot_dimension_numbers<[1], [0], [0], [1], [0, 0, 1, 1], [], []>} : vector<64x4xf32>, vector<4x8xf32>, vector<64x8xf32> -> vector<64x8xf32>
    %54 = arith.addf %48, %53 : vector<64x8xf32>
    %55 = vector.extract_strided_slice %1 {offsets = [1, 1, 0], sizes = [8, 8, 4], strides = [1, 1, 1]} : vector<9x9x4xf32> to vector<8x8x4xf32>
    %56 = vector.shape_cast %55 : vector<8x8x4xf32> to vector<64x4xf32>
    %c8 = arith.constant 8 : index
    %c0_43 = arith.constant 0 : index
    %c0_44 = arith.constant 0 : index
    %57 = vector.load %arg2[%c8, %c0_43, %c0_44] : memref<9x4x8xf32, #tpu.memory_space<vmem>>, vector<1x4x8xf32>
    %58 = vector.shape_cast %57 : vector<1x4x8xf32> to vector<4x8xf32>
    %cst_45 = arith.constant dense<0.000000e+00> : vector<64x8xf32>
    %59 = tpu.matmul %56, %58, %cst_45 {dimension_numbers = #tpu.dot_dimension_numbers<[1], [0], [0], [1], [0, 0, 1, 1], [], []>} : vector<64x4xf32>, vector<4x8xf32>, vector<64x8xf32> -> vector<64x8xf32>
    %60 = arith.addf %54, %59 : vector<64x8xf32>
    %c0_46 = arith.constant 0 : index
    %c0_47 = arith.constant 0 : index
    %c0_48 = arith.constant 0 : index
    %61 = vector.load %arg4[%c0_46, %c0_47, %c0_48] : memref<1x64x8xf32, #tpu.memory_space<vmem>>, vector<1x64x8xf32>
    %62 = vector.shape_cast %61 : vector<1x64x8xf32> to vector<64x8xf32>
    %63 = vector.shape_cast %60 : vector<64x8xf32> to vector<1x64x8xf32>
    tpu.vector_store %arg4[%c0_46, %c0_47, %c0_48], %63 {strides = array<i32>} : memref<1x64x8xf32, #tpu.memory_space<vmem>>, vector<1x64x8xf32>,
    %cst_49 = arith.constant dense<0.000000e+00> : vector<8xf32>
    %64 = vector.multi_reduction <add>, %60, %cst_49 [0] : vector<64x8xf32> to vector<8xf32>
    %65 = vector.shape_cast %64 : vector<8xf32> to vector<1x8xf32>
    %c0_50 = arith.constant 0 : index
    %c0_51 = arith.constant 0 : index
    %c0_52 = arith.constant 0 : index
    %66 = vector.load %arg6[%c0_50, %c0_51, %c0_52] : memref<1x4x8xf32, #tpu.memory_space<vmem>>, vector<1x1x8xf32>
    %67 = vector.shape_cast %66 : vector<1x1x8xf32> to vector<1x8xf32>
    %68 = vector.shape_cast %65 : vector<1x8xf32> to vector<1x1x8xf32>
    tpu.vector_store %arg6[%c0_50, %c0_51, %c0_52], %68 {strides = array<i32>} : memref<1x4x8xf32, #tpu.memory_space<vmem>>, vector<1x1x8xf32>,
    %69 = arith.mulf %60, %60 : vector<64x8xf32>
    %cst_53 = arith.constant dense<0.000000e+00> : vector<8xf32>
    %70 = vector.multi_reduction <add>, %69, %cst_53 [0] : vector<64x8xf32> to vector<8xf32>
    %71 = vector.shape_cast %70 : vector<8xf32> to vector<1x8xf32>
    %c0_54 = arith.constant 0 : index
    %c1_55 = arith.constant 1 : index
    %c0_56 = arith.constant 0 : index
    %72 = vector.load %arg6[%c0_54, %c1_55, %c0_56] : memref<1x4x8xf32, #tpu.memory_space<vmem>>, vector<1x1x8xf32>
    %73 = vector.shape_cast %72 : vector<1x1x8xf32> to vector<1x8xf32>
    %74 = vector.shape_cast %71 : vector<1x8xf32> to vector<1x1x8xf32>
    tpu.vector_store %arg6[%c0_54, %c1_55, %c0_56], %74 {strides = array<i32>} : memref<1x4x8xf32, #tpu.memory_space<vmem>>, vector<1x1x8xf32>,
    %c0_57 = arith.constant 0 : index
    %c0_58 = arith.constant 0 : index
    %75 = vector.load %arg3[%c0_57, %c0_58] : memref<4x8xf32, #tpu.memory_space<vmem>>, vector<4x8xf32>
    %cst_59 = arith.constant dense<0.000000e+00> : vector<64x8xf32>
    %76 = tpu.matmul %32, %75, %cst_59 {dimension_numbers = #tpu.dot_dimension_numbers<[1], [0], [0], [1], [0, 0, 1, 1], [], []>} : vector<64x4xf32>, vector<4x8xf32>, vector<64x8xf32> -> vector<64x8xf32>
    %cst_60 = arith.constant dense<0.000000e+00> : vector<8xf32>
    %77 = vector.multi_reduction <add>, %76, %cst_60 [0] : vector<64x8xf32> to vector<8xf32>
    %78 = vector.shape_cast %77 : vector<8xf32> to vector<1x8xf32>
    %c0_61 = arith.constant 0 : index
    %c2_62 = arith.constant 2 : index
    %c0_63 = arith.constant 0 : index
    %79 = vector.load %arg6[%c0_61, %c2_62, %c0_63] : memref<1x4x8xf32, #tpu.memory_space<vmem>>, vector<1x1x8xf32>
    %80 = vector.shape_cast %79 : vector<1x1x8xf32> to vector<1x8xf32>
    %81 = vector.shape_cast %78 : vector<1x8xf32> to vector<1x1x8xf32>
    tpu.vector_store %arg6[%c0_61, %c2_62, %c0_63], %81 {strides = array<i32>} : memref<1x4x8xf32, #tpu.memory_space<vmem>>, vector<1x1x8xf32>,
    %82 = arith.mulf %76, %76 : vector<64x8xf32>
    %cst_64 = arith.constant dense<0.000000e+00> : vector<8xf32>
    %83 = vector.multi_reduction <add>, %82, %cst_64 [0] : vector<64x8xf32> to vector<8xf32>
    %84 = vector.shape_cast %83 : vector<8xf32> to vector<1x8xf32>
    %c0_65 = arith.constant 0 : index
    %c3_66 = arith.constant 3 : index
    %c0_67 = arith.constant 0 : index
    %85 = vector.load %arg6[%c0_65, %c3_66, %c0_67] : memref<1x4x8xf32, #tpu.memory_space<vmem>>, vector<1x1x8xf32>
    %86 = vector.shape_cast %85 : vector<1x1x8xf32> to vector<1x8xf32>
    %87 = vector.shape_cast %84 : vector<1x8xf32> to vector<1x1x8xf32>
    tpu.vector_store %arg6[%c0_65, %c3_66, %c0_67], %87 {strides = array<i32>} : memref<1x4x8xf32, #tpu.memory_space<vmem>>, vector<1x1x8xf32>,
    %c0_68 = arith.constant 0 : index
    %c0_69 = arith.constant 0 : index
    %c0_70 = arith.constant 0 : index
    %88 = vector.load %arg5[%c0_68, %c0_69, %c0_70] : memref<1x64x8xf32, #tpu.memory_space<vmem>>, vector<1x64x8xf32>
    %89 = vector.shape_cast %88 : vector<1x64x8xf32> to vector<64x8xf32>
    %90 = vector.shape_cast %76 : vector<64x8xf32> to vector<1x64x8xf32>
    tpu.vector_store %arg5[%c0_68, %c0_69, %c0_70], %90 {strides = array<i32>} : memref<1x64x8xf32, #tpu.memory_space<vmem>>, vector<1x64x8xf32>,
    return
  }
  func.func @transform_0(%arg0: i32) -> (i32, i32, i32, i32, i32) {
    %c0_i32 = arith.constant 0 : i32
    %c0_i32_0 = arith.constant 0 : i32
    %c0_i32_1 = arith.constant 0 : i32
    %c0_i32_2 = arith.constant 0 : i32
    %c0_i32_3 = arith.constant 0 : i32
    return %c0_i32, %arg0, %c0_i32_0, %c0_i32_1, %c0_i32_2 : i32, i32, i32, i32, i32
  }
  func.func @transform_1(%arg0: i32) -> (i32, i32, i32) {
    %c0_i32 = arith.constant 0 : i32
    %c0_i32_0 = arith.constant 0 : i32
    %c0_i32_1 = arith.constant 0 : i32
    %c0_i32_2 = arith.constant 0 : i32
    return %c0_i32, %c0_i32_0, %c0_i32_1 : i32, i32, i32
  }
  func.func @transform_2(%arg0: i32) -> (i32, i32) {
    %c0_i32 = arith.constant 0 : i32
    %c0_i32_0 = arith.constant 0 : i32
    %c0_i32_1 = arith.constant 0 : i32
    return %c0_i32, %c0_i32_0 : i32, i32
  }
  func.func @transform_3(%arg0: i32) -> (i32, i32, i32) {
    %c0_i32 = arith.constant 0 : i32
    %c0_i32_0 = arith.constant 0 : i32
    %c0_i32_1 = arith.constant 0 : i32
    return %arg0, %c0_i32, %c0_i32_0 : i32, i32, i32
  }
  func.func @transform_4(%arg0: i32) -> (i32, i32, i32) {
    %c0_i32 = arith.constant 0 : i32
    %c0_i32_0 = arith.constant 0 : i32
    %c0_i32_1 = arith.constant 0 : i32
    return %arg0, %c0_i32, %c0_i32_0 : i32, i32, i32
  }
  func.func @transform_5(%arg0: i32) -> (i32, i32, i32) {
    %c0_i32 = arith.constant 0 : i32
    %c0_i32_0 = arith.constant 0 : i32
    %c0_i32_1 = arith.constant 0 : i32
    return %arg0, %c0_i32, %c0_i32_0 : i32, i32, i32
  }
}

</mosaic_0001>

<llo_original>
// kernel: tpu_custom_call.1
$region0: #{tpu_custom_call.1}
  #allocation0 [shape = 'u32[]', space=smem, size = 0x4, offset = 0x4, fixed_abs, tag = 'smem constant byte address 0x4 - core index']
  #allocation1 [shape = 'u32[72,128]{1,0:T(1,128)}', space=vmem, size = 0x9000, scoped, tag = 'internal scratch']
  %s0 = inlined_call_operand.vmem [shape: f32[4,2,9,9,4], index: 0, kind: input, shape index: {}]
  %s1 = inlined_call_operand.vmem [shape: f32[9,4,8], index: 1, kind: input, shape index: {}]
  %s2 = inlined_call_operand.vmem [shape: f32[4,8], index: 2, kind: input, shape index: {}]
  %s3 = inlined_call_operand.vmem [shape: f32[2,64,8], index: 3, kind: output, shape index: {0}]
  %s4 = inlined_call_operand.vmem [shape: f32[2,64,8], index: 4, kind: output, shape index: {1}]
  %s5 = inlined_call_operand.hbm [shape: f32[2,4,8], index: 5, kind: output, shape index: {2}]
  %6 = xla_tuple %s3, %s4, %s5
  %s7 = sld [smem:[#allocation0]]
  $region99: #{tpu_custom_call.1} parent=0
    _
  %s9 = ssub.s32 1, %s7
  %s10 = scalar_select 0, %s9, %s7
  $region1: #{tpu_custom_call.1} parent=0
    #allocation2 [shape = 'u8[589824]{0}', space=vmem, size = 0x90000, scoped, tag = 'input window, operand 0']
    #allocation3 [shape = 'u8[4096]{0}', space=vmem, size = 0x1000, scoped, tag = 'output window, operand 2']
    #allocation4 [shape = 's32[2]{0}', space=sflag, size = 0x8, scoped, tag = 'scoped memory for tpu_custom_call.1']
    %11 = vsyncpa [#allocation4], 0
    %s12 = scalar_lea.sflag [#allocation4], 1
    %13 = vsyncpa %s12, 0
    loop: start=0, step=1, limit=4
    $region2: #{tpu_custom_call.1} parent=1 // loop_pre_header
      _
    $region3: #{tpu_custom_call.1} parent=1 // loop_header
      %s15 = sphi 0, %s19
      %p16 = scmp.ge.s32.totalorder %s15, 4
      %s25 = sphi 0, %s27
      %s28 = sphi 0, %s25
      %s29 = sphi 0, %s28
      %s45 = sphi 0, %s29
      %s49 = sphi 0, %s49
      %s51 = sphi 0, %s49
      %s52 = sphi 0, %s51
      %s66 = sphi 0, %s52
      %s70 = sphi 0, %s70
      %s72 = sphi 0, %s70
      %s73 = sphi 0, %s72
      %s87 = sphi 0, %s73
      %s93 = sphi 0, %s95
      %s96 = sphi 0, %s93
      %s97 = sphi 0, %s96
      %s113 = sphi 0, %s97
      %s119 = sphi 0, %s121
      %s122 = sphi 0, %s119
      %s123 = sphi 0, %s122
      %s139 = sphi 0, %s123
      %s145 = sphi 0, %s147
      %s148 = sphi 0, %s145
      %s149 = sphi 0, %s148
      %s165 = sphi 0, %s149
    $region4: #{tpu_custom_call.1} parent=1 // loop_header_branch
      %18 = sbr.rel (%p16) target = $region8
    $region5: #{tpu_custom_call.1} parent=1 // loop_body
      %s20 = ssub.s32 %s15, 1
      %s21 = ssub.s32 %s15, 2
      %s22 = sadd.s32 %s15, 1
      %s23 = ssub.s32 %s15, %s22
      %p24 = scmp.eq.s32.totalorder %s23, 0
      %s26 = sadd.s32 %s25, 1
      %s27 = scalar_select %p24, %s25, %s26
      %p30 = pneg %p24
      %p31 = scmp.eq.s32.totalorder %s15, 1
      %p32 = por %p30, %p31
      %p33 = scmp.ne.s32.totalorder %s25, %s28
      %p34 = scmp.eq.s32.totalorder %s15, 0
      %p35 = por %p33, %p34
      %p36 = scmp.ne.s32.totalorder %s25, %s28
      %p37 = scmp.eq.s32.totalorder %s20, 1
      %p38 = por %p36, %p37
      %p39 = scmp.ne.s32.totalorder %s28, %s29
      %p40 = scmp.eq.s32.totalorder %s20, 0
      %p41 = por %p39, %p40
      %p42 = scmp.ne.s32.totalorder %s28, %s29
      %p43 = scmp.eq.s32.totalorder %s21, 1
      %p44 = por %p42, %p43
      %p46 = scmp.ne.s32.totalorder %s29, %s45
      %p47 = scmp.eq.s32.totalorder %s21, 0
      %p48 = por %p46, %p47
      %s50 = sadd.s32 %s49, 1
      %p53 = scmp.eq.s32.totalorder %s15, 1
      %p54 = scmp.ne.s32.totalorder %s49, %s51
      %p55 = scmp.eq.s32.totalorder %s15, 0
      %p56 = por %p54, %p55
      %p57 = scmp.ne.s32.totalorder %s49, %s51
      %p58 = scmp.eq.s32.totalorder %s20, 1
      %p59 = por %p57, %p58
      %p60 = scmp.ne.s32.totalorder %s51, %s52
      %p61 = scmp.eq.s32.totalorder %s20, 0
      %p62 = por %p60, %p61
      %p63 = scmp.ne.s32.totalorder %s51, %s52
      %p64 = scmp.eq.s32.totalorder %s21, 1
      %p65 = por %p63, %p64
      %p67 = scmp.ne.s32.totalorder %s52, %s66
      %p68 = scmp.eq.s32.totalorder %s21, 0
      %p69 = por %p67, %p68
      %s71 = sadd.s32 %s70, 1
      %p74 = scmp.eq.s32.totalorder %s15, 1
      %p75 = scmp.ne.s32.totalorder %s70, %s72
      %p76 = scmp.eq.s32.totalorder %s15, 0
      %p77 = por %p75, %p76
      %p78 = scmp.ne.s32.totalorder %s70, %s72
      %p79 = scmp.eq.s32.totalorder %s20, 1
      %p80 = por %p78, %p79
      %p81 = scmp.ne.s32.totalorder %s72, %s73
      %p82 = scmp.eq.s32.totalorder %s20, 0
      %p83 = por %p81, %p82
      %p84 = scmp.ne.s32.totalorder %s72, %s73
      %p85 = scmp.eq.s32.totalorder %s21, 1
      %p86 = por %p84, %p85
      %p88 = scmp.ne.s32.totalorder %s73, %s87
      %p89 = scmp.eq.s32.totalorder %s21, 0
      %p90 = por %p88, %p89
      %s91 = ssub.s32 %s15, %s22
      %p92 = scmp.eq.s32.totalorder %s91, 0
      %s94 = sadd.s32 %s93, 1
      %s95 = scalar_select %p92, %s93, %s94
      %p98 = pneg %p92
      %p99 = scmp.eq.s32.totalorder %s15, 1
      %p100 = por %p98, %p99
      %p101 = scmp.ne.s32.totalorder %s93, %s96
      %p102 = scmp.eq.s32.totalorder %s15, 0
      %p103 = por %p101, %p102
      %p104 = scmp.ne.s32.totalorder %s93, %s96
      %p105 = scmp.eq.s32.totalorder %s20, 1
      %p106 = por %p104, %p105
      %p107 = scmp.ne.s32.totalorder %s96, %s97
      %p108 = scmp.eq.s32.totalorder %s20, 0
      %p109 = por %p107, %p108
      %p110 = scmp.ne.s32.totalorder %s96, %s97
      %p111 = scmp.eq.s32.totalorder %s21, 1
      %p112 = por %p110, %p111
      %p114 = scmp.ne.s32.totalorder %s97, %s113
      %p115 = scmp.eq.s32.totalorder %s21, 0
      %p116 = por %p114, %p115
      %s117 = ssub.s32 %s15, %s22
      %p118 = scmp.eq.s32.totalorder %s117, 0
      %s120 = sadd.s32 %s119, 1
      %s121 = scalar_select %p118, %s119, %s120
      %p124 = pneg %p118
      %p125 = scmp.eq.s32.totalorder %s15, 1
      %p126 = por %p124, %p125
      %p127 = scmp.ne.s32.totalorder %s119, %s122
      %p128 = scmp.eq.s32.totalorder %s15, 0
      %p129 = por %p127, %p128
      %p130 = scmp.ne.s32.totalorder %s119, %s122
      %p131 = scmp.eq.s32.totalorder %s20, 1
      %p132 = por %p130, %p131
      %p133 = scmp.ne.s32.totalorder %s122, %s123
      %p134 = scmp.eq.s32.totalorder %s20, 0
      %p135 = por %p133, %p134
      %p136 = scmp.ne.s32.totalorder %s122, %s123
      %p137 = scmp.eq.s32.totalorder %s21, 1
      %p138 = por %p136, %p137
      %p140 = scmp.ne.s32.totalorder %s123, %s139
      %p141 = scmp.eq.s32.totalorder %s21, 0
      %p142 = por %p140, %p141
      %s143 = ssub.s32 %s15, %s22
      %p144 = scmp.eq.s32.totalorder %s143, 0
      %s146 = sadd.s32 %s145, 1
      %s147 = scalar_select %p144, %s145, %s146
      %p150 = pneg %p144
      %p151 = scmp.eq.s32.totalorder %s15, 1
      %p152 = por %p150, %p151
      %p153 = scmp.ne.s32.totalorder %s145, %s148
      %p154 = scmp.eq.s32.totalorder %s15, 0
      %p155 = por %p153, %p154
      %p156 = scmp.ne.s32.totalorder %s145, %s148
      %p157 = scmp.eq.s32.totalorder %s20, 1
      %p158 = por %p156, %p157
      %p159 = scmp.ne.s32.totalorder %s148, %s149
      %p160 = scmp.eq.s32.totalorder %s20, 0
      %p161 = por %p159, %p160
      %p162 = scmp.ne.s32.totalorder %s148, %s149
      %p163 = scmp.eq.s32.totalorder %s21, 1
      %p164 = por %p162, %p163
      %p166 = scmp.ne.s32.totalorder %s149, %s165
      %p167 = scmp.eq.s32.totalorder %s21, 0
      %p168 = por %p166, %p167
      %p169 = scmp.le.s32.totalorder 1, %s15
      %p170 = scmp.lt.s32.totalorder %s15, 3
      %p171 = pnand %p169, %p170
      %p172 = pneg %p171
      // Predicated region
      $region9: #{tpu_custom_call.1} parent=5 // pred_check
        _
      $region10: #{tpu_custom_call.1} parent=5 // pred_check_branch
        %174 = sbr.rel (%p171) target = $region12
      $region11: #{tpu_custom_call.1} parent=5 // pred_region
        %s175 = ssub.s32 %s15, 1
        // Predicated region
        $region13: #{tpu_custom_call.1} parent=11 // pred_check
          %p176 = pneg %p62
        $region14: #{tpu_custom_call.1} parent=11 // pred_check_branch
          %178 = sbr.rel (%p176) target = $region16
        $region15: #{tpu_custom_call.1} parent=11 // pred_region
          _
        $region16: #{tpu_custom_call.1} parent=11 // pred_fallthru
          _
        // Predicated region
        $region17: #{tpu_custom_call.1} parent=11 // pred_check
          %p179 = pneg %p83
        $region18: #{tpu_custom_call.1} parent=11 // pred_check_branch
          %181 = sbr.rel (%p179) target = $region20
        $region19: #{tpu_custom_call.1} parent=11 // pred_region
          _
        $region20: #{tpu_custom_call.1} parent=11 // pred_fallthru
          _
      $region12: #{tpu_custom_call.1} parent=5 // pred_fallthru
        _
      %p182 = scmp.lt.s32.totalorder %s15, 2
      // Predicated region
      $region21: #{tpu_custom_call.1} parent=5 // pred_check
        %p183 = pneg %p182
      $region22: #{tpu_custom_call.1} parent=5 // pred_check_branch
        %185 = sbr.rel (%p183) target = $region24
      $region23: #{tpu_custom_call.1} parent=5 // pred_region
        // Predicated region
        $region25: #{tpu_custom_call.1} parent=23 // pred_check
          %p186 = pneg %p35
        $region26: #{tpu_custom_call.1} parent=23 // pred_check_branch
          %188 = sbr.rel (%p186) target = $region28
        $region27: #{tpu_custom_call.1} parent=23 // pred_region
          %s189 = sand.u32 %s25, 1
          %s190 = sand.u32 %s25, 1
          %s191 = smul.addr %s190, 576
          %s192 = scalar_lea.vmem [#allocation2], %s191
          %s193 = smul.addr %s15, 18
          %s194 = smul.addr %s193, 8
          %s195 = scalar_lea.vmem %s0, %s194
          // Predicated region
          $region29: #{tpu_custom_call.1} parent=27 // pred_check
            _
          $region30: #{tpu_custom_call.1} parent=27 // pred_check_branch
            %197 = sbr.rel (0) target = $region32
          $region31: #{tpu_custom_call.1} parent=27 // pred_region
            // Predicated region
            $region33: #{tpu_custom_call.1} parent=31 // pred_check
              _
            $region34: #{tpu_custom_call.1} parent=31 // pred_check_branch
              %199 = sbr.rel (0) target = $region36
            $region35: #{tpu_custom_call.1} parent=31 // pred_region
              // Predicated region
              $region48: #{tpu_custom_call.1} parent=35 // pred_check
                _
              $region49: #{tpu_custom_call.1} parent=35 // pred_check_branch
                %357 = sbr.rel (0) target = $region51
              $region50: #{tpu_custom_call.1} parent=35 // pred_region
                loop: start=0, step=1, limit=1
                $region52: #{tpu_custom_call.1} parent=50 // loop_pre_header
                  _
                $region53: #{tpu_custom_call.1} parent=50 // loop_header
                  %s359 = sphi 0, %s363
                  %p360 = scmp.ge.s32.totalorder %s359, 1
                  %s364 = sphi %s195, %s195
                  %s365 = sphi %s192, %s192
                $region54: #{tpu_custom_call.1} parent=50 // loop_header_branch
                  %362 = sbr.rel (%p360) target = $region58
                $region55: #{tpu_custom_call.1} parent=50 // loop_body
                  %v366 = vld [vmem:[%s364] sm:$0xff]
                  %367 = vst [vmem:[%s365] sm:$0xff] %v366
                  %v368 = vld [vmem:[%s364 + $0x8] sm:$0xff]
                  %369 = vst [vmem:[%s365 + $0x8] sm:$0xff] %v368
                  %v370 = vld [vmem:[%s364 + $0x10] sm:$0xff]
                  %371 = vst [vmem:[%s365 + $0x10] sm:$0xff] %v370
                  %v372 = vld [vmem:[%s364 + $0x18] sm:$0xff]
                  %373 = vst [vmem:[%s365 + $0x18] sm:$0xff] %v372
                  %v374 = vld [vmem:[%s364 + $0x20] sm:$0xff]
                  %375 = vst [vmem:[%s365 + $0x20] sm:$0xff] %v374
                  %v376 = vld [vmem:[%s364 + $0x28] sm:$0xff]
                  %377 = vst [vmem:[%s365 + $0x28] sm:$0xff] %v376
                  %v378 = vld [vmem:[%s364 + $0x30] sm:$0xff]
                  %379 = vst [vmem:[%s365 + $0x30] sm:$0xff] %v378
                  %v380 = vld [vmem:[%s364 + $0x38] sm:$0xff]
                  %381 = vst [vmem:[%s365 + $0x38] sm:$0xff] %v380
                  %v382 = vld [vmem:[%s364 + $0x40] sm:$0xff]
                  %383 = vst [vmem:[%s365 + $0x40] sm:$0xff] %v382
                  %v384 = vld [vmem:[%s364 + $0x48] sm:$0xff]
                  %385 = vst [vmem:[%s365 + $0x48] sm:$0xff] %v384
                  %v386 = vld [vmem:[%s364 + $0x50] sm:$0xff]
                  %387 = vst [vmem:[%s365 + $0x50] sm:$0xff] %v386
                  %v388 = vld [vmem:[%s364 + $0x58] sm:$0xff]
                  %389 = vst [vmem:[%s365 + $0x58] sm:$0xff] %v388
                  %v390 = vld [vmem:[%s364 + $0x60] sm:$0xff]
                  %391 = vst [vmem:[%s365 + $0x60] sm:$0xff] %v390
                  %v392 = vld [vmem:[%s364 + $0x68] sm:$0xff]
                  %393 = vst [vmem:[%s365 + $0x68] sm:$0xff] %v392
                  %v394 = vld [vmem:[%s364 + $0x70] sm:$0xff]
                  %395 = vst [vmem:[%s365 + $0x70] sm:$0xff] %v394
                  %v396 = vld [vmem:[%s364 + $0x78] sm:$0xff]
                  %397 = vst [vmem:[%s365 + $0x78] sm:$0xff] %v396
                  %v398 = vld [vmem:[%s364 + $0x80] sm:$0xff]
                  %399 = vst [vmem:[%s365 + $0x80] sm:$0xff] %v398
                  %v400 = vld [vmem:[%s364 + $0x88] sm:$0xff]
                  %401 = vst [vmem:[%s365 + $0x88] sm:$0xff] %v400
                  %v402 = vld [vmem:[%s364 + $0x120] sm:$0xff]
                  %403 = vst [vmem:[%s365 + $0x90] sm:$0xff] %v402
                  %v404 = vld [vmem:[%s364 + $0x128] sm:$0xff]
                  %405 = vst [vmem:[%s365 + $0x98] sm:$0xff] %v404
                  %v406 = vld [vmem:[%s364 + $0x130] sm:$0xff]
                  %407 = vst [vmem:[%s365 + $0xa0] sm:$0xff] %v406
                  %v408 = vld [vmem:[%s364 + $0x138] sm:$0xff]
                  %409 = vst [vmem:[%s365 + $0xa8] sm:$0xff] %v408
                  %v410 = vld [vmem:[%s364 + $0x140] sm:$0xff]
                  %411 = vst [vmem:[%s365 + $0xb0] sm:$0xff] %v410
                  %v412 = vld [vmem:[%s364 + $0x148] sm:$0xff]
                  %413 = vst [vmem:[%s365 + $0xb8] sm:$0xff] %v412
                  %v414 = vld [vmem:[%s364 + $0x150] sm:$0xff]
                  %415 = vst [vmem:[%s365 + $0xc0] sm:$0xff] %v414
                  %v416 = vld [vmem:[%s364 + $0x158] sm:$0xff]
                  %417 = vst [vmem:[%s365 + $0xc8] sm:$0xff] %v416
                  %v418 = vld [vmem:[%s364 + $0x160] sm:$0xff]
                  %419 = vst [vmem:[%s365 + $0xd0] sm:$0xff] %v418
                  %v420 = vld [vmem:[%s364 + $0x168] sm:$0xff]
                  %421 = vst [vmem:[%s365 + $0xd8] sm:$0xff] %v420
                  %v422 = vld [vmem:[%s364 + $0x170] sm:$0xff]
                  %423 = vst [vmem:[%s365 + $0xe0] sm:$0xff] %v422
                  %v424 = vld [vmem:[%s364 + $0x178] sm:$0xff]
                  %425 = vst [vmem:[%s365 + $0xe8] sm:$0xff] %v424
                  %v426 = vld [vmem:[%s364 + $0x180] sm:$0xff]
                  %427 = vst [vmem:[%s365 + $0xf0] sm:$0xff] %v426
                  %v428 = vld [vmem:[%s364 + $0x188] sm:$0xff]
                  %429 = vst [vmem:[%s365 + $0xf8] sm:$0xff] %v428
                  %v430 = vld [vmem:[%s364 + $0x190] sm:$0xff]
                  %431 = vst [vmem:[%s365 + $0x100] sm:$0xff] %v430
                  %v432 = vld [vmem:[%s364 + $0x198] sm:$0xff]
                  %433 = vst [vmem:[%s365 + $0x108] sm:$0xff] %v432
                  %v434 = vld [vmem:[%s364 + $0x1a0] sm:$0xff]
                  %435 = vst [vmem:[%s365 + $0x110] sm:$0xff] %v434
                  %v436 = vld [vmem:[%s364 + $0x1a8] sm:$0xff]
                  %437 = vst [vmem:[%s365 + $0x118] sm:$0xff] %v436
                  %v438 = vld [vmem:[%s364 + $0x240] sm:$0xff]
                  %439 = vst [vmem:[%s365 + $0x120] sm:$0xff] %v438
                  %v440 = vld [vmem:[%s364 + $0x248] sm:$0xff]
                  %441 = vst [vmem:[%s365 + $0x128] sm:$0xff] %v440
                  %v442 = vld [vmem:[%s364 + $0x250] sm:$0xff]
                  %443 = vst [vmem:[%s365 + $0x130] sm:$0xff] %v442
                  %v444 = vld [vmem:[%s364 + $0x258] sm:$0xff]
                  %445 = vst [vmem:[%s365 + $0x138] sm:$0xff] %v444
                  %v446 = vld [vmem:[%s364 + $0x260] sm:$0xff]
                  %447 = vst [vmem:[%s365 + $0x140] sm:$0xff] %v446
                  %v448 = vld [vmem:[%s364 + $0x268] sm:$0xff]
                  %449 = vst [vmem:[%s365 + $0x148] sm:$0xff] %v448
                  %v450 = vld [vmem:[%s364 + $0x270] sm:$0xff]
                  %451 = vst [vmem:[%s365 + $0x150] sm:$0xff] %v450
                  %v452 = vld [vmem:[%s364 + $0x278] sm:$0xff]
                  %453 = vst [vmem:[%s365 + $0x158] sm:$0xff] %v452
                  %v454 = vld [vmem:[%s364 + $0x280] sm:$0xff]
                  %455 = vst [vmem:[%s365 + $0x160] sm:$0xff] %v454
                  %v456 = vld [vmem:[%s364 + $0x288] sm:$0xff]
                  %457 = vst [vmem:[%s365 + $0x168] sm:$0xff] %v456
                  %v458 = vld [vmem:[%s364 + $0x290] sm:$0xff]
                  %459 = vst [vmem:[%s365 + $0x170] sm:$0xff] %v458
                  %v460 = vld [vmem:[%s364 + $0x298] sm:$0xff]
                  %461 = vst [vmem:[%s365 + $0x178] sm:$0xff] %v460
                  %v462 = vld [vmem:[%s364 + $0x2a0] sm:$0xff]
                  %463 = vst [vmem:[%s365 + $0x180] sm:$0xff] %v462
                  %v464 = vld [vmem:[%s364 + $0x2a8] sm:$0xff]
                  %465 = vst [vmem:[%s365 + $0x188] sm:$0xff] %v464
                  %v466 = vld [vmem:[%s364 + $0x2b0] sm:$0xff]
                  %467 = vst [vmem:[%s365 + $0x190] sm:$0xff] %v466
                  %v468 = vld [vmem:[%s364 + $0x2b8] sm:$0xff]
                  %469 = vst [vmem:[%s365 + $0x198] sm:$0xff] %v468
                  %v470 = vld [vmem:[%s364 + $0x2c0] sm:$0xff]
                  %471 = vst [vmem:[%s365 + $0x1a0] sm:$0xff] %v470
                  %v472 = vld [vmem:[%s364 + $0x2c8] sm:$0xff]
                  %473 = vst [vmem:[%s365 + $0x1a8] sm:$0xff] %v472
                  %v474 = vld [vmem:[%s364 + $0x360] sm:$0xff]
                  %475 = vst [vmem:[%s365 + $0x1b0] sm:$0xff] %v474
                  %v476 = vld [vmem:[%s364 + $0x368] sm:$0xff]
                  %477 = vst [vmem:[%s365 + $0x1b8] sm:$0xff] %v476
                  %v478 = vld [vmem:[%s364 + $0x370] sm:$0xff]
                  %479 = vst [vmem:[%s365 + $0x1c0] sm:$0xff] %v478
                  %v480 = vld [vmem:[%s364 + $0x378] sm:$0xff]
                  %481 = vst [vmem:[%s365 + $0x1c8] sm:$0xff] %v480
                  %v482 = vld [vmem:[%s364 + $0x380] sm:$0xff]
                  %483 = vst [vmem:[%s365 + $0x1d0] sm:$0xff] %v482
                  %v484 = vld [vmem:[%s364 + $0x388] sm:$0xff]
                  %485 = vst [vmem:[%s365 + $0x1d8] sm:$0xff] %v484
                  %v486 = vld [vmem:[%s364 + $0x390] sm:$0xff]
                  %487 = vst [vmem:[%s365 + $0x1e0] sm:$0xff] %v486
                  %v488 = vld [vmem:[%s364 + $0x398] sm:$0xff]
                  %489 = vst [vmem:[%s365 + $0x1e8] sm:$0xff] %v488
                  %v490 = vld [vmem:[%s364 + $0x3a0] sm:$0xff]
                  %491 = vst [vmem:[%s365 + $0x1f0] sm:$0xff] %v490
                  %v492 = vld [vmem:[%s364 + $0x3a8] sm:$0xff]
                  %493 = vst [vmem:[%s365 + $0x1f8] sm:$0xff] %v492
                  %v494 = vld [vmem:[%s364 + $0x3b0] sm:$0xff]
                  %495 = vst [vmem:[%s365 + $0x200] sm:$0xff] %v494
                  %v496 = vld [vmem:[%s364 + $0x3b8] sm:$0xff]
                  %497 = vst [vmem:[%s365 + $0x208] sm:$0xff] %v496
                  %v498 = vld [vmem:[%s364 + $0x3c0] sm:$0xff]
                  %499 = vst [vmem:[%s365 + $0x210] sm:$0xff] %v498
                  %v500 = vld [vmem:[%s364 + $0x3c8] sm:$0xff]
                  %501 = vst [vmem:[%s365 + $0x218] sm:$0xff] %v500
                  %v502 = vld [vmem:[%s364 + $0x3d0] sm:$0xff]
                  %503 = vst [vmem:[%s365 + $0x220] sm:$0xff] %v502
                  %v504 = vld [vmem:[%s364 + $0x3d8] sm:$0xff]
                  %505 = vst [vmem:[%s365 + $0x228] sm:$0xff] %v504
                  %v506 = vld [vmem:[%s364 + $0x3e0] sm:$0xff]
                  %507 = vst [vmem:[%s365 + $0x230] sm:$0xff] %v506
                  %v508 = vld [vmem:[%s364 + $0x3e8] sm:$0xff]
                  %509 = vst [vmem:[%s365 + $0x238] sm:$0xff] %v508
                $region56: #{tpu_custom_call.1} parent=50 // loop_footer
                  %s363 = sadd.s32 1, %s359
                $region57: #{tpu_custom_call.1} parent=50 // loop_footer_branch
                  %358 = sbr.rel target = $region53
                $region58: #{tpu_custom_call.1} parent=50 // loop_exit
                  _
              $region51: #{tpu_custom_call.1} parent=35 // pred_fallthru
                _
              // Predicated region
              $region59: #{tpu_custom_call.1} parent=35 // pred_check
                _
              $region60: #{tpu_custom_call.1} parent=35 // pred_check_branch
                %511 = sbr.rel target = $region62
              $region61: #{tpu_custom_call.1} parent=35 // pred_region
                _
              $region62: #{tpu_custom_call.1} parent=35 // pred_fallthru
                _
            $region36: #{tpu_custom_call.1} parent=31 // pred_fallthru
              _
            // Predicated region
            $region37: #{tpu_custom_call.1} parent=31 // pred_check
              _
            $region38: #{tpu_custom_call.1} parent=31 // pred_check_branch
              %201 = sbr.rel target = $region40
            $region39: #{tpu_custom_call.1} parent=31 // pred_region
              %s203 = ssub.s32 256, 1
              loop: start=0, step=1, limit=1
              $region41: #{tpu_custom_call.1} parent=39 // loop_pre_header
                _
              $region42: #{tpu_custom_call.1} parent=39 // loop_header
                %s205 = sphi 0, %s209
                %p206 = scmp.ge.s32.totalorder %s205, 1
                %s210 = sphi %s195, %s195
                %s211 = sphi %s192, %s192
              $region43: #{tpu_custom_call.1} parent=39 // loop_header_branch
                %208 = sbr.rel (%p206) target = $region47
              $region44: #{tpu_custom_call.1} parent=39 // loop_body
                %v212 = vld [vmem:[%s210] sm:%s203]
                %213 = vst [vmem:[%s211] sm:%s203] %v212
                %v214 = vld [vmem:[%s210 + $0x8] sm:%s203]
                %215 = vst [vmem:[%s211 + $0x8] sm:%s203] %v214
                %v216 = vld [vmem:[%s210 + $0x10] sm:%s203]
                %217 = vst [vmem:[%s211 + $0x10] sm:%s203] %v216
                %v218 = vld [vmem:[%s210 + $0x18] sm:%s203]
                %219 = vst [vmem:[%s211 + $0x18] sm:%s203] %v218
                %v220 = vld [vmem:[%s210 + $0x20] sm:%s203]
                %221 = vst [vmem:[%s211 + $0x20] sm:%s203] %v220
                %v222 = vld [vmem:[%s210 + $0x28] sm:%s203]
                %223 = vst [vmem:[%s211 + $0x28] sm:%s203] %v222
                %v224 = vld [vmem:[%s210 + $0x30] sm:%s203]
                %225 = vst [vmem:[%s211 + $0x30] sm:%s203] %v224
                %v226 = vld [vmem:[%s210 + $0x38] sm:%s203]
                %227 = vst [vmem:[%s211 + $0x38] sm:%s203] %v226
                %v228 = vld [vmem:[%s210 + $0x40] sm:%s203]
                %229 = vst [vmem:[%s211 + $0x40] sm:%s203] %v228
                %v230 = vld [vmem:[%s210 + $0x48] sm:%s203]
                %231 = vst [vmem:[%s211 + $0x48] sm:%s203] %v230
                %v232 = vld [vmem:[%s210 + $0x50] sm:%s203]
                %233 = vst [vmem:[%s211 + $0x50] sm:%s203] %v232
                %v234 = vld [vmem:[%s210 + $0x58] sm:%s203]
                %235 = vst [vmem:[%s211 + $0x58] sm:%s203] %v234
                %v236 = vld [vmem:[%s210 + $0x60] sm:%s203]
                %237 = vst [vmem:[%s211 + $0x60] sm:%s203] %v236
                %v238 = vld [vmem:[%s210 + $0x68] sm:%s203]
                %239 = vst [vmem:[%s211 + $0x68] sm:%s203] %v238
                %v240 = vld [vmem:[%s210 + $0x70] sm:%s203]
                %241 = vst [vmem:[%s211 + $0x70] sm:%s203] %v240
                %v242 = vld [vmem:[%s210 + $0x78] sm:%s203]
                %243 = vst [vmem:[%s211 + $0x78] sm:%s203] %v242
                %v244 = vld [vmem:[%s210 + $0x80] sm:%s203]
                %245 = vst [vmem:[%s211 + $0x80] sm:%s203] %v244
                %v246 = vld [vmem:[%s210 + $0x88] sm:%s203]
                %247 = vst [vmem:[%s211 + $0x88] sm:%s203] %v246
                %v248 = vld [vmem:[%s210 + $0x120] sm:%s203]
                %249 = vst [vmem:[%s211 + $0x90] sm:%s203] %v248
                %v250 = vld [vmem:[%s210 + $0x128] sm:%s203]
                %251 = vst [vmem:[%s211 + $0x98] sm:%s203] %v250
                %v252 = vld [vmem:[%s210 + $0x130] sm:%s203]
                %253 = vst [vmem:[%s211 + $0xa0] sm:%s203] %v252
                %v254 = vld [vmem:[%s210 + $0x138] sm:%s203]
                %255 = vst [vmem:[%s211 + $0xa8] sm:%s203] %v254
                %v256 = vld [vmem:[%s210 + $0x140] sm:%s203]
                %257 = vst [vmem:[%s211 + $0xb0] sm:%s203] %v256
                %v258 = vld [vmem:[%s210 + $0x148] sm:%s203]
                %259 = vst [vmem:[%s211 + $0xb8] sm:%s203] %v258
                %v260 = vld [vmem:[%s210 + $0x150] sm:%s203]
                %261 = vst [vmem:[%s211 + $0xc0] sm:%s203] %v260
                %v262 = vld [vmem:[%s210 + $0x158] sm:%s203]
                %263 = vst [vmem:[%s211 + $0xc8] sm:%s203] %v262
                %v264 = vld [vmem:[%s210 + $0x160] sm:%s203]
                %265 = vst [vmem:[%s211 + $0xd0] sm:%s203] %v264
                %v266 = vld [vmem:[%s210 + $0x168] sm:%s203]
                %267 = vst [vmem:[%s211 + $0xd8] sm:%s203] %v266
                %v268 = vld [vmem:[%s210 + $0x170] sm:%s203]
                %269 = vst [vmem:[%s211 + $0xe0] sm:%s203] %v268
                %v270 = vld [vmem:[%s210 + $0x178] sm:%s203]
                %271 = vst [vmem:[%s211 + $0xe8] sm:%s203] %v270
                %v272 = vld [vmem:[%s210 + $0x180] sm:%s203]
                %273 = vst [vmem:[%s211 + $0xf0] sm:%s203] %v272
                %v274 = vld [vmem:[%s210 + $0x188] sm:%s203]
                %275 = vst [vmem:[%s211 + $0xf8] sm:%s203] %v274
                %v276 = vld [vmem:[%s210 + $0x190] sm:%s203]
                %277 = vst [vmem:[%s211 + $0x100] sm:%s203] %v276
                %v278 = vld [vmem:[%s210 + $0x198] sm:%s203]
                %279 = vst [vmem:[%s211 + $0x108] sm:%s203] %v278
                %v280 = vld [vmem:[%s210 + $0x1a0] sm:%s203]
                %281 = vst [vmem:[%s211 + $0x110] sm:%s203] %v280
                %v282 = vld [vmem:[%s210 + $0x1a8] sm:%s203]
                %283 = vst [vmem:[%s211 + $0x118] sm:%s203] %v282
                %v284 = vld [vmem:[%s210 + $0x240] sm:%s203]
                %285 = vst [vmem:[%s211 + $0x120] sm:%s203] %v284
                %v286 = vld [vmem:[%s210 + $0x248] sm:%s203]
                %287 = vst [vmem:[%s211 + $0x128] sm:%s203] %v286
                %v288 = vld [vmem:[%s210 + $0x250] sm:%s203]
                %289 = vst [vmem:[%s211 + $0x130] sm:%s203] %v288
                %v290 = vld [vmem:[%s210 + $0x258] sm:%s203]
                %291 = vst [vmem:[%s211 + $0x138] sm:%s203] %v290
                %v292 = vld [vmem:[%s210 + $0x260] sm:%s203]
                %293 = vst [vmem:[%s211 + $0x140] sm:%s203] %v292
                %v294 = vld [vmem:[%s210 + $0x268] sm:%s203]
                %295 = vst [vmem:[%s211 + $0x148] sm:%s203] %v294
                %v296 = vld [vmem:[%s210 + $0x270] sm:%s203]
                %297 = vst [vmem:[%s211 + $0x150] sm:%s203] %v296
                %v298 = vld [vmem:[%s210 + $0x278] sm:%s203]
                %299 = vst [vmem:[%s211 + $0x158] sm:%s203] %v298
                %v300 = vld [vmem:[%s210 + $0x280] sm:%s203]
                %301 = vst [vmem:[%s211 + $0x160] sm:%s203] %v300
                %v302 = vld [vmem:[%s210 + $0x288] sm:%s203]
                %303 = vst [vmem:[%s211 + $0x168] sm:%s203] %v302
                %v304 = vld [vmem:[%s210 + $0x290] sm:%s203]
                %305 = vst [vmem:[%s211 + $0x170] sm:%s203] %v304
                %v306 = vld [vmem:[%s210 + $0x298] sm:%s203]
                %307 = vst [vmem:[%s211 + $0x178] sm:%s203] %v306
                %v308 = vld [vmem:[%s210 + $0x2a0] sm:%s203]
                %309 = vst [vmem:[%s211 + $0x180] sm:%s203] %v308
                %v310 = vld [vmem:[%s210 + $0x2a8] sm:%s203]
                %311 = vst [vmem:[%s211 + $0x188] sm:%s203] %v310
                %v312 = vld [vmem:[%s210 + $0x2b0] sm:%s203]
                %313 = vst [vmem:[%s211 + $0x190] sm:%s203] %v312
                %v314 = vld [vmem:[%s210 + $0x2b8] sm:%s203]
                %315 = vst [vmem:[%s211 + $0x198] sm:%s203] %v314
                %v316 = vld [vmem:[%s210 + $0x2c0] sm:%s203]
                %317 = vst [vmem:[%s211 + $0x1a0] sm:%s203] %v316
                %v318 = vld [vmem:[%s210 + $0x2c8] sm:%s203]
                %319 = vst [vmem:[%s211 + $0x1a8] sm:%s203] %v318
                %v320 = vld [vmem:[%s210 + $0x360] sm:%s203]
                %321 = vst [vmem:[%s211 + $0x1b0] sm:%s203] %v320
                %v322 = vld [vmem:[%s210 + $0x368] sm:%s203]
                %323 = vst [vmem:[%s211 + $0x1b8] sm:%s203] %v322
                %v324 = vld [vmem:[%s210 + $0x370] sm:%s203]
                %325 = vst [vmem:[%s211 + $0x1c0] sm:%s203] %v324
                %v326 = vld [vmem:[%s210 + $0x378] sm:%s203]
                %327 = vst [vmem:[%s211 + $0x1c8] sm:%s203] %v326
                %v328 = vld [vmem:[%s210 + $0x380] sm:%s203]
                %329 = vst [vmem:[%s211 + $0x1d0] sm:%s203] %v328
                %v330 = vld [vmem:[%s210 + $0x388] sm:%s203]
                %331 = vst [vmem:[%s211 + $0x1d8] sm:%s203] %v330
                %v332 = vld [vmem:[%s210 + $0x390] sm:%s203]
                %333 = vst [vmem:[%s211 + $0x1e0] sm:%s203] %v332
                %v334 = vld [vmem:[%s210 + $0x398] sm:%s203]
                %335 = vst [vmem:[%s211 + $0x1e8] sm:%s203] %v334
                %v336 = vld [vmem:[%s210 + $0x3a0] sm:%s203]
                %337 = vst [vmem:[%s211 + $0x1f0] sm:%s203] %v336
                %v338 = vld [vmem:[%s210 + $0x3a8] sm:%s203]
                %339 = vst [vmem:[%s211 + $0x1f8] sm:%s203] %v338
                %v340 = vld [vmem:[%s210 + $0x3b0] sm:%s203]
                %341 = vst [vmem:[%s211 + $0x200] sm:%s203] %v340
                %v342 = vld [vmem:[%s210 + $0x3b8] sm:%s203]
                %343 = vst [vmem:[%s211 + $0x208] sm:%s203] %v342
                %v344 = vld [vmem:[%s210 + $0x3c0] sm:%s203]
                %345 = vst [vmem:[%s211 + $0x210] sm:%s203] %v344
                %v346 = vld [vmem:[%s210 + $0x3c8] sm:%s203]
                %347 = vst [vmem:[%s211 + $0x218] sm:%s203] %v346
                %v348 = vld [vmem:[%s210 + $0x3d0] sm:%s203]
                %349 = vst [vmem:[%s211 + $0x220] sm:%s203] %v348
                %v350 = vld [vmem:[%s210 + $0x3d8] sm:%s203]
                %351 = vst [vmem:[%s211 + $0x228] sm:%s203] %v350
                %v352 = vld [vmem:[%s210 + $0x3e0] sm:%s203]
                %353 = vst [vmem:[%s211 + $0x230] sm:%s203] %v352
                %v354 = vld [vmem:[%s210 + $0x3e8] sm:%s203]
                %355 = vst [vmem:[%s211 + $0x238] sm:%s203] %v354
              $region45: #{tpu_custom_call.1} parent=39 // loop_footer
                %s209 = sadd.s32 1, %s205
              $region46: #{tpu_custom_call.1} parent=39 // loop_footer_branch
                %204 = sbr.rel target = $region42
              $region47: #{tpu_custom_call.1} parent=39 // loop_exit
                _
            $region40: #{tpu_custom_call.1} parent=31 // pred_fallthru
              _
          $region32: #{tpu_custom_call.1} parent=27 // pred_fallthru
            _
          %512 = vnop
        $region28: #{tpu_custom_call.1} parent=23 // pred_fallthru
          _
      $region24: #{tpu_custom_call.1} parent=5 // pred_fallthru
        _
      %p513 = scmp.le.s32.totalorder 1, %s15
      %p514 = scmp.lt.s32.totalorder %s15, 3
      %p515 = pnand %p513, %p514
      %p516 = pneg %p515
      // Predicated region
      $region63: #{tpu_custom_call.1} parent=5 // pred_check
        _
      $region64: #{tpu_custom_call.1} parent=5 // pred_check_branch
        %518 = sbr.rel (%p515) target = $region66
      $region65: #{tpu_custom_call.1} parent=5 // pred_region
        %s519 = ssub.s32 %s15, 1
        %s520 = sand.u32 %s28, 1
        %s521 = sand.u32 %s28, 1
        %s522 = smul.addr %s521, 576
        %s523 = scalar_lea.vmem [#allocation2], %s522
        // Predicated region
        $region67: #{tpu_custom_call.1} parent=65 // pred_check
          %p524 = pneg %p41
        $region68: #{tpu_custom_call.1} parent=65 // pred_check_branch
          %526 = sbr.rel (%p524) target = $region70
        $region69: #{tpu_custom_call.1} parent=65 // pred_region
          _
        $region70: #{tpu_custom_call.1} parent=65 // pred_fallthru
          _
        %s527 = sand.u32 %s28, 1
        %s528 = sand.u32 %s28, 1
        %s529 = smul.addr %s528, 576
        %s530 = scalar_lea.vmem [#allocation2], %s529
        %p531 = pneg %p41
        %p532 = pneg %p38
        %p533 = pneg %p62
        %p534 = pneg %p59
        %p535 = pneg %p83
        %p536 = pneg %p80
        %p537 = pneg %p109
        %p538 = pneg %p106
        %p539 = scmp.lt.s32.totalorder %s20, 1
        %s540 = scalar_select %p539, %s20, 1
        %s541 = smul.addr %s540, 8
        %s542 = smul.addr %s541, 8
        %s543 = scalar_lea.vmem %s3, %s542
        %p544 = pneg %p135
        %p545 = pneg %p132
        %p546 = scmp.lt.s32.totalorder %s20, 1
        %s547 = scalar_select %p546, %s20, 1
        %s548 = smul.addr %s547, 8
        %s549 = smul.addr %s548, 8
        %s550 = scalar_lea.vmem %s4, %s549
        %p551 = pneg %p161
        %p552 = pneg %p158
        %s553 = sand.u32 %s148, 1
        %s554 = scalar_lea.sflag [#allocation4], %s553
        %s555 = sand.u32 %s148, 1
        %s556 = smul.addr %s555, 4
        %s557 = scalar_lea.vmem [#allocation3], %s556
        %p558 = scmp.lt.s32.totalorder %s20, 1
        %s559 = scalar_select %p558, %s20, 1
        %s560 = smul.addr %s559, 8
        %s561 = smul.addr %s560, 8
        %s562 = scalar_lea.vmem %s3, %s561
        %p563 = scmp.lt.s32.totalorder %s20, 1
        %s564 = scalar_select %p563, %s20, 1
        %s565 = smul.addr %s564, 8
        %s566 = smul.addr %s565, 8
        %s567 = scalar_lea.vmem %s4, %s566
        %v568 = vld [vmem:[%s523] sm:$0xff]
        %v569 = vld [vmem:[%s523 + $0x8] sm:$0x1]
        %v570 = vld [vmem:[%s523 + $0x10] sm:$0xff]
        %v571 = vld [vmem:[%s523 + $0x18] sm:$0x1]
        %v572 = vld [vmem:[%s523 + $0x20] sm:$0xff]
        %v573 = vld [vmem:[%s523 + $0x28] sm:$0x1]
        %v574 = vld [vmem:[%s523 + $0x30] sm:$0xff]
        %v575 = vld [vmem:[%s523 + $0x38] sm:$0x1]
        %v576 = vld [vmem:[%s523 + $0x40] sm:$0xff]
        %v577 = vld [vmem:[%s523 + $0x48] sm:$0x1]
        %v578 = vld [vmem:[%s523 + $0x50] sm:$0xff]
        %v579 = vld [vmem:[%s523 + $0x58] sm:$0x1]
        %v580 = vld [vmem:[%s523 + $0x60] sm:$0xff]
        %v581 = vld [vmem:[%s523 + $0x68] sm:$0x1]
        %v582 = vld [vmem:[%s523 + $0x70] sm:$0xff]
        %v583 = vld [vmem:[%s523 + $0x78] sm:$0x1]
        %v584 = vld [vmem:[%s523 + $0x80] sm:$0xff]
        %v585 = vld [vmem:[%s523 + $0x88] sm:$0x1]
        %s586 = scalar_lea.vmem %s523, 144 [#allocation2]
        %v587 = vld [vmem:[%s586] sm:$0xff]
        %v588 = vld [vmem:[%s586 + $0x10] sm:$0xff]
        %v589 = vld [vmem:[%s586 + $0x20] sm:$0xff]
        %v590 = vld [vmem:[%s586 + $0x30] sm:$0xff]
        %v591 = vld [vmem:[%s586 + $0x40] sm:$0xff]
        %v592 = vld [vmem:[%s586 + $0x50] sm:$0xff]
        %v593 = vld [vmem:[%s586 + $0x60] sm:$0xff]
        %v594 = vld [vmem:[%s586 + $0x70] sm:$0xff]
        %v595 = vld [vmem:[%s586 + $0x80] sm:$0xff]
        %s596 = scalar_lea.vmem %s523, 288 [#allocation2]
        %v597 = vld [vmem:[%s596] sm:$0xff]
        %v598 = vld [vmem:[%s596 + $0x8] sm:$0x1]
        %v599 = vld [vmem:[%s596 + $0x10] sm:$0xff]
        %v600 = vld [vmem:[%s596 + $0x18] sm:$0x1]
        %v601 = vld [vmem:[%s596 + $0x20] sm:$0xff]
        %v602 = vld [vmem:[%s596 + $0x28] sm:$0x1]
        %v603 = vld [vmem:[%s596 + $0x30] sm:$0xff]
        %v604 = vld [vmem:[%s596 + $0x38] sm:$0x1]
        %v605 = vld [vmem:[%s596 + $0x40] sm:$0xff]
        %v606 = vld [vmem:[%s596 + $0x48] sm:$0x1]
        %v607 = vld [vmem:[%s596 + $0x50] sm:$0xff]
        %v608 = vld [vmem:[%s596 + $0x58] sm:$0x1]
        %v609 = vld [vmem:[%s596 + $0x60] sm:$0xff]
        %v610 = vld [vmem:[%s596 + $0x68] sm:$0x1]
        %v611 = vld [vmem:[%s596 + $0x70] sm:$0xff]
        %v612 = vld [vmem:[%s596 + $0x78] sm:$0x1]
        %s613 = scalar_lea.vmem %s523, 432 [#allocation2]
        %v614 = vld [vmem:[%s613] sm:$0xff]
        %v615 = vld [vmem:[%s613 + $0x10] sm:$0xff]
        %v616 = vld [vmem:[%s613 + $0x20] sm:$0xff]
        %v617 = vld [vmem:[%s613 + $0x30] sm:$0xff]
        %v618 = vld [vmem:[%s613 + $0x40] sm:$0xff]
        %v619 = vld [vmem:[%s613 + $0x50] sm:$0xff]
        %v620 = vld [vmem:[%s613 + $0x60] sm:$0xff]
        %v621 = vld [vmem:[%s613 + $0x70] sm:$0xff]
        %v622 = vld [vmem:[%s1] sm:$0xf]
        %s623 = scalar_lea.vmem %s1, 4
        %v624 = vld [vmem:[%s623] sm:$0xf]
        %vm625 = vcmask 31744
        %v627 = vsel %vm625, %v587, 0
        %v630 = vsel %vm625, %v588, 0
        %v633 = vsel %vm625, %v589, 0
        %v636 = vsel %vm625, %v590, 0
        %v639 = vsel %vm625, %v591, 0
        %v642 = vsel %vm625, %v592, 0
        %v645 = vsel %vm625, %v593, 0
        %v648 = vsel %vm625, %v594, 0
        %vm650 = vcmask 1043456
        %v652 = vsel %vm650, %v624, 0
        %654 = vmatpush.msra.mxu0 0.0
        %655 = vmatpush.msra.mxu0 0.0
        %656 = vmatpush.msra.mxu0 0.0
        %657 = vmatpush.msra.mxu0 0.0
        %658 = vmatpush.msra.mxu0 0.0
        %659 = vmatpush.msra.mxu0 0.0
        %660 = vmatpush.msra.mxu0 0.0
        %661 = vmatpush.msra.mxu0 0.0
        %662 = vmatpush.msra.mxu0 0.0
        %663 = vmatpush.msra.mxu0 0.0
        %664 = vmatpush.msra.mxu0 0.0
        %665 = vmatpush.msra.mxu0 0.0
        %666 = vmatpush.msra.mxu0 0.0
        %667 = vmatpush.msra.mxu0 0.0
        %668 = vmatpush.msra.mxu0 0.0
        %669 = vmatpush.msra.mxu0 %v652
        %670 = vmatmul.f32.gmra.mxu0 %v627
        %v671 = vpop.f32.mrf.mxu0
        %v672 = vadd.f32 0.0, %v671
        %673 = vmatmul.f32.gmra.mxu0 %v630
        %v674 = vpop.f32.mrf.mxu0
        %v675 = vadd.f32 0.0, %v674
        %676 = vmatmul.f32.gmra.mxu0 %v633
        %v677 = vpop.f32.mrf.mxu0
        %v678 = vadd.f32 0.0, %v677
        %679 = vmatmul.f32.gmra.mxu0 %v636
        %v680 = vpop.f32.mrf.mxu0
        %v681 = vadd.f32 0.0, %v680
        %682 = vmatmul.f32.gmra.mxu0 %v639
        %v683 = vpop.f32.mrf.mxu0
        %v684 = vadd.f32 0.0, %v683
        %685 = vmatmul.f32.gmra.mxu0 %v642
        %v686 = vpop.f32.mrf.mxu0
        %v687 = vadd.f32 0.0, %v686
        %688 = vmatmul.f32.gmra.mxu0 %v645
        %v689 = vpop.f32.mrf.mxu0
        %v690 = vadd.f32 0.0, %v689
        %691 = vmatmul.f32.gmra.mxu0 %v648
        %v692 = vpop.f32.mrf.mxu0
        %v693 = vadd.f32 0.0, %v692
        %694 = vdwg.mxu0
        %v696 = vsel %vm625, %v568, 0
        %v699 = vsel %vm625, %v570, 0
        %v702 = vsel %vm625, %v572, 0
        %v705 = vsel %vm625, %v574, 0
        %v708 = vsel %vm625, %v576, 0
        %v711 = vsel %vm625, %v578, 0
        %v714 = vsel %vm625, %v580, 0
        %v717 = vsel %vm625, %v582, 0
        %v720 = vsel %vm650, %v622, 0
        %722 = vmatpush.msra.mxu0 0.0
        %723 = vmatpush.msra.mxu0 0.0
        %724 = vmatpush.msra.mxu0 0.0
        %725 = vmatpush.msra.mxu0 0.0
        %726 = vmatpush.msra.mxu0 0.0
        %727 = vmatpush.msra.mxu0 0.0
        %728 = vmatpush.msra.mxu0 0.0
        %729 = vmatpush.msra.mxu0 0.0
        %730 = vmatpush.msra.mxu0 0.0
        %731 = vmatpush.msra.mxu0 0.0
        %732 = vmatpush.msra.mxu0 0.0
        %733 = vmatpush.msra.mxu0 0.0
        %734 = vmatpush.msra.mxu0 0.0
        %735 = vmatpush.msra.mxu0 0.0
        %736 = vmatpush.msra.mxu0 0.0
        %737 = vmatpush.msra.mxu0 %v720
        %738 = vmatmul.f32.gmra.mxu0 %v696
        %v739 = vpop.f32.mrf.mxu0
        %v740 = vadd.f32 %v672, %v739
        %741 = vmatmul.f32.gmra.mxu0 %v699
        %v742 = vpop.f32.mrf.mxu0
        %v743 = vadd.f32 %v675, %v742
        %744 = vmatmul.f32.gmra.mxu0 %v702
        %v745 = vpop.f32.mrf.mxu0
        %v746 = vadd.f32 %v678, %v745
        %747 = vmatmul.f32.gmra.mxu0 %v705
        %v748 = vpop.f32.mrf.mxu0
        %v749 = vadd.f32 %v681, %v748
        %750 = vmatmul.f32.gmra.mxu0 %v708
        %v751 = vpop.f32.mrf.mxu0
        %v752 = vadd.f32 %v684, %v751
        %753 = vmatmul.f32.gmra.mxu0 %v711
        %v754 = vpop.f32.mrf.mxu0
        %v755 = vadd.f32 %v687, %v754
        %756 = vmatmul.f32.gmra.mxu0 %v714
        %v757 = vpop.f32.mrf.mxu0
        %v758 = vadd.f32 %v690, %v757
        %759 = vmatmul.f32.gmra.mxu0 %v717
        %v760 = vpop.f32.mrf.mxu0
        %v761 = vadd.f32 %v693, %v760
        %762 = vdwg.mxu0
        %vm771 = vcmask 1046528
        %v772 = vrot.slane %v568, 1
        %v773 = vrot.slane %v569, 1
        %v774 = vsel %vm771, %v772, %v773
        %v775 = vrot.slane %v570, 1
        %v776 = vrot.slane %v571, 1
        %v777 = vsel %vm771, %v775, %v776
        %v778 = vrot.slane %v572, 1
        %v779 = vrot.slane %v573, 1
        %v780 = vsel %vm771, %v778, %v779
        %v781 = vrot.slane %v574, 1
        %v782 = vrot.slane %v575, 1
        %v783 = vsel %vm771, %v781, %v782
        %v784 = vrot.slane %v576, 1
        %v785 = vrot.slane %v577, 1
        %v786 = vsel %vm771, %v784, %v785
        %v787 = vrot.slane %v578, 1
        %v788 = vrot.slane %v579, 1
        %v789 = vsel %vm771, %v787, %v788
        %v790 = vrot.slane %v580, 1
        %v791 = vrot.slane %v581, 1
        %v792 = vsel %vm771, %v790, %v791
        %v793 = vrot.slane %v582, 1
        %v794 = vrot.slane %v583, 1
        %v795 = vsel %vm771, %v793, %v794
        %s796 = scalar_lea.vmem %s1, 8
        %v797 = vld [vmem:[%s796] sm:$0xf]
        %v798 = vsel %vm625, %v774, 0
        %v800 = vsel %vm625, %v777, 0
        %v802 = vsel %vm625, %v780, 0
        %v804 = vsel %vm625, %v783, 0
        %v806 = vsel %vm625, %v786, 0
        %v808 = vsel %vm625, %v789, 0
        %v810 = vsel %vm625, %v792, 0
        %v812 = vsel %vm625, %v795, 0
        %v815 = vsel %vm650, %v797, 0
        %817 = vmatpush.msra.mxu0 0.0
        %818 = vmatpush.msra.mxu0 0.0
        %819 = vmatpush.msra.mxu0 0.0
        %820 = vmatpush.msra.mxu0 0.0
        %821 = vmatpush.msra.mxu0 0.0
        %822 = vmatpush.msra.mxu0 0.0
        %823 = vmatpush.msra.mxu0 0.0
        %824 = vmatpush.msra.mxu0 0.0
        %825 = vmatpush.msra.mxu0 0.0
        %826 = vmatpush.msra.mxu0 0.0
        %827 = vmatpush.msra.mxu0 0.0
        %828 = vmatpush.msra.mxu0 0.0
        %829 = vmatpush.msra.mxu0 0.0
        %830 = vmatpush.msra.mxu0 0.0
        %831 = vmatpush.msra.mxu0 0.0
        %832 = vmatpush.msra.mxu0 %v815
        %833 = vmatmul.f32.gmra.mxu0 %v798
        %v834 = vpop.f32.mrf.mxu0
        %v835 = vadd.f32 0.0, %v834
        %836 = vmatmul.f32.gmra.mxu0 %v800
        %v837 = vpop.f32.mrf.mxu0
        %v838 = vadd.f32 0.0, %v837
        %839 = vmatmul.f32.gmra.mxu0 %v802
        %v840 = vpop.f32.mrf.mxu0
        %v841 = vadd.f32 0.0, %v840
        %842 = vmatmul.f32.gmra.mxu0 %v804
        %v843 = vpop.f32.mrf.mxu0
        %v844 = vadd.f32 0.0, %v843
        %845 = vmatmul.f32.gmra.mxu0 %v806
        %v846 = vpop.f32.mrf.mxu0
        %v847 = vadd.f32 0.0, %v846
        %848 = vmatmul.f32.gmra.mxu0 %v808
        %v849 = vpop.f32.mrf.mxu0
        %v850 = vadd.f32 0.0, %v849
        %851 = vmatmul.f32.gmra.mxu0 %v810
        %v852 = vpop.f32.mrf.mxu0
        %v853 = vadd.f32 0.0, %v852
        %854 = vmatmul.f32.gmra.mxu0 %v812
        %v855 = vpop.f32.mrf.mxu0
        %v856 = vadd.f32 0.0, %v855
        %857 = vdwg.mxu0
        %v858 = vadd.f32 %v740, %v835
        %v859 = vadd.f32 %v743, %v838
        %v860 = vadd.f32 %v746, %v841
        %v861 = vadd.f32 %v749, %v844
        %v862 = vadd.f32 %v752, %v847
        %v863 = vadd.f32 %v755, %v850
        %v864 = vadd.f32 %v758, %v853
        %v865 = vadd.f32 %v761, %v856
        %s866 = scalar_lea.vmem %s1, 12
        %v867 = vld [vmem:[%s866] sm:$0xf]
        %v869 = vsel %vm625, %v597, 0
        %v872 = vsel %vm625, %v599, 0
        %v875 = vsel %vm625, %v601, 0
        %v878 = vsel %vm625, %v603, 0
        %v881 = vsel %vm625, %v605, 0
        %v884 = vsel %vm625, %v607, 0
        %v887 = vsel %vm625, %v609, 0
        %v890 = vsel %vm625, %v611, 0
        %v893 = vsel %vm650, %v867, 0
        %895 = vmatpush.msra.mxu0 0.0
        %896 = vmatpush.msra.mxu0 0.0
        %897 = vmatpush.msra.mxu0 0.0
        %898 = vmatpush.msra.mxu0 0.0
        %899 = vmatpush.msra.mxu0 0.0
        %900 = vmatpush.msra.mxu0 0.0
        %901 = vmatpush.msra.mxu0 0.0
        %902 = vmatpush.msra.mxu0 0.0
        %903 = vmatpush.msra.mxu0 0.0
        %904 = vmatpush.msra.mxu0 0.0
        %905 = vmatpush.msra.mxu0 0.0
        %906 = vmatpush.msra.mxu0 0.0
        %907 = vmatpush.msra.mxu0 0.0
        %908 = vmatpush.msra.mxu0 0.0
        %909 = vmatpush.msra.mxu0 0.0
        %910 = vmatpush.msra.mxu0 %v893
        %911 = vmatmul.f32.gmra.mxu0 %v869
        %v912 = vpop.f32.mrf.mxu0
        %v913 = vadd.f32 0.0, %v912
        %914 = vmatmul.f32.gmra.mxu0 %v872
        %v915 = vpop.f32.mrf.mxu0
        %v916 = vadd.f32 0.0, %v915
        %917 = vmatmul.f32.gmra.mxu0 %v875
        %v918 = vpop.f32.mrf.mxu0
        %v919 = vadd.f32 0.0, %v918
        %920 = vmatmul.f32.gmra.mxu0 %v878
        %v921 = vpop.f32.mrf.mxu0
        %v922 = vadd.f32 0.0, %v921
        %923 = vmatmul.f32.gmra.mxu0 %v881
        %v924 = vpop.f32.mrf.mxu0
        %v925 = vadd.f32 0.0, %v924
        %926 = vmatmul.f32.gmra.mxu0 %v884
        %v927 = vpop.f32.mrf.mxu0
        %v928 = vadd.f32 0.0, %v927
        %929 = vmatmul.f32.gmra.mxu0 %v887
        %v930 = vpop.f32.mrf.mxu0
        %v931 = vadd.f32 0.0, %v930
        %932 = vmatmul.f32.gmra.mxu0 %v890
        %v933 = vpop.f32.mrf.mxu0
        %v934 = vadd.f32 0.0, %v933
        %935 = vdwg.mxu0
        %v936 = vadd.f32 %v858, %v913
        %v937 = vadd.f32 %v859, %v916
        %v938 = vadd.f32 %v860, %v919
        %v939 = vadd.f32 %v861, %v922
        %v940 = vadd.f32 %v862, %v925
        %v941 = vadd.f32 %v863, %v928
        %v942 = vadd.f32 %v864, %v931
        %v943 = vadd.f32 %v865, %v934
        %s944 = scalar_lea.vmem %s1, 16
        %v945 = vld [vmem:[%s944] sm:$0xf]
        %v947 = vsel %vm625, %v614, 0
        %v950 = vsel %vm625, %v615, 0
        %v953 = vsel %vm625, %v616, 0
        %v956 = vsel %vm625, %v617, 0
        %v959 = vsel %vm625, %v618, 0
        %v962 = vsel %vm625, %v619, 0
        %v965 = vsel %vm625, %v620, 0
        %v968 = vsel %vm625, %v621, 0
        %v971 = vsel %vm650, %v945, 0
        %973 = vmatpush.msra.mxu0 0.0
        %974 = vmatpush.msra.mxu0 0.0
        %975 = vmatpush.msra.mxu0 0.0
        %976 = vmatpush.msra.mxu0 0.0
        %977 = vmatpush.msra.mxu0 0.0
        %978 = vmatpush.msra.mxu0 0.0
        %979 = vmatpush.msra.mxu0 0.0
        %980 = vmatpush.msra.mxu0 0.0
        %981 = vmatpush.msra.mxu0 0.0
        %982 = vmatpush.msra.mxu0 0.0
        %983 = vmatpush.msra.mxu0 0.0
        %984 = vmatpush.msra.mxu0 0.0
        %985 = vmatpush.msra.mxu0 0.0
        %986 = vmatpush.msra.mxu0 0.0
        %987 = vmatpush.msra.mxu0 0.0
        %988 = vmatpush.msra.mxu0 %v971
        %989 = vmatmul.f32.gmra.mxu0 %v947
        %v990 = vpop.f32.mrf.mxu0
        %v991 = vadd.f32 0.0, %v990
        %992 = vmatmul.f32.gmra.mxu0 %v950
        %v993 = vpop.f32.mrf.mxu0
        %v994 = vadd.f32 0.0, %v993
        %995 = vmatmul.f32.gmra.mxu0 %v953
        %v996 = vpop.f32.mrf.mxu0
        %v997 = vadd.f32 0.0, %v996
        %998 = vmatmul.f32.gmra.mxu0 %v956
        %v999 = vpop.f32.mrf.mxu0
        %v1000 = vadd.f32 0.0, %v999
        %1001 = vmatmul.f32.gmra.mxu0 %v959
        %v1002 = vpop.f32.mrf.mxu0
        %v1003 = vadd.f32 0.0, %v1002
        %1004 = vmatmul.f32.gmra.mxu0 %v962
        %v1005 = vpop.f32.mrf.mxu0
        %v1006 = vadd.f32 0.0, %v1005
        %1007 = vmatmul.f32.gmra.mxu0 %v965
        %v1008 = vpop.f32.mrf.mxu0
        %v1009 = vadd.f32 0.0, %v1008
        %1010 = vmatmul.f32.gmra.mxu0 %v968
        %v1011 = vpop.f32.mrf.mxu0
        %v1012 = vadd.f32 0.0, %v1011
        %1013 = vdwg.mxu0
        %v1014 = vadd.f32 %v936, %v991
        %v1015 = vadd.f32 %v937, %v994
        %v1016 = vadd.f32 %v938, %v997
        %v1017 = vadd.f32 %v939, %v1000
        %v1018 = vadd.f32 %v940, %v1003
        %v1019 = vadd.f32 %v941, %v1006
        %v1020 = vadd.f32 %v942, %v1009
        %v1021 = vadd.f32 %v943, %v1012
        %v1030 = vrot.slane %v597, 1
        %v1031 = vrot.slane %v598, 1
        %v1032 = vsel %vm771, %v1030, %v1031
        %v1033 = vrot.slane %v599, 1
        %v1034 = vrot.slane %v600, 1
        %v1035 = vsel %vm771, %v1033, %v1034
        %v1036 = vrot.slane %v601, 1
        %v1037 = vrot.slane %v602, 1
        %v1038 = vsel %vm771, %v1036, %v1037
        %v1039 = vrot.slane %v603, 1
        %v1040 = vrot.slane %v604, 1
        %v1041 = vsel %vm771, %v1039, %v1040
        %v1042 = vrot.slane %v605, 1
        %v1043 = vrot.slane %v606, 1
        %v1044 = vsel %vm771, %v1042, %v1043
        %v1045 = vrot.slane %v607, 1
        %v1046 = vrot.slane %v608, 1
        %v1047 = vsel %vm771, %v1045, %v1046
        %v1048 = vrot.slane %v609, 1
        %v1049 = vrot.slane %v610, 1
        %v1050 = vsel %vm771, %v1048, %v1049
        %v1051 = vrot.slane %v611, 1
        %v1052 = vrot.slane %v612, 1
        %v1053 = vsel %vm771, %v1051, %v1052
        %s1054 = scalar_lea.vmem %s1, 20
        %v1055 = vld [vmem:[%s1054] sm:$0xf]
        %v1056 = vsel %vm625, %v1032, 0
        %v1058 = vsel %vm625, %v1035, 0
        %v1060 = vsel %vm625, %v1038, 0
        %v1062 = vsel %vm625, %v1041, 0
        %v1064 = vsel %vm625, %v1044, 0
        %v1066 = vsel %vm625, %v1047, 0
        %v1068 = vsel %vm625, %v1050, 0
        %v1070 = vsel %vm625, %v1053, 0
        %v1073 = vsel %vm650, %v1055, 0
        %1075 = vmatpush.msra.mxu0 0.0
        %1076 = vmatpush.msra.mxu0 0.0
        %1077 = vmatpush.msra.mxu0 0.0
        %1078 = vmatpush.msra.mxu0 0.0
        %1079 = vmatpush.msra.mxu0 0.0
        %1080 = vmatpush.msra.mxu0 0.0
        %1081 = vmatpush.msra.mxu0 0.0
        %1082 = vmatpush.msra.mxu0 0.0
        %1083 = vmatpush.msra.mxu0 0.0
        %1084 = vmatpush.msra.mxu0 0.0
        %1085 = vmatpush.msra.mxu0 0.0
        %1086 = vmatpush.msra.mxu0 0.0
        %1087 = vmatpush.msra.mxu0 0.0
        %1088 = vmatpush.msra.mxu0 0.0
        %1089 = vmatpush.msra.mxu0 0.0
        %1090 = vmatpush.msra.mxu0 %v1073
        %1091 = vmatmul.f32.gmra.mxu0 %v1056
        %v1092 = vpop.f32.mrf.mxu0
        %v1093 = vadd.f32 0.0, %v1092
        %1094 = vmatmul.f32.gmra.mxu0 %v1058
        %v1095 = vpop.f32.mrf.mxu0
        %v1096 = vadd.f32 0.0, %v1095
        %1097 = vmatmul.f32.gmra.mxu0 %v1060
        %v1098 = vpop.f32.mrf.mxu0
        %v1099 = vadd.f32 0.0, %v1098
        %1100 = vmatmul.f32.gmra.mxu0 %v1062
        %v1101 = vpop.f32.mrf.mxu0
        %v1102 = vadd.f32 0.0, %v1101
        %1103 = vmatmul.f32.gmra.mxu0 %v1064
        %v1104 = vpop.f32.mrf.mxu0
        %v1105 = vadd.f32 0.0, %v1104
        %1106 = vmatmul.f32.gmra.mxu0 %v1066
        %v1107 = vpop.f32.mrf.mxu0
        %v1108 = vadd.f32 0.0, %v1107
        %1109 = vmatmul.f32.gmra.mxu0 %v1068
        %v1110 = vpop.f32.mrf.mxu0
        %v1111 = vadd.f32 0.0, %v1110
        %1112 = vmatmul.f32.gmra.mxu0 %v1070
        %v1113 = vpop.f32.mrf.mxu0
        %v1114 = vadd.f32 0.0, %v1113
        %1115 = vdwg.mxu0
        %v1116 = vadd.f32 %v1014, %v1093
        %v1117 = vadd.f32 %v1015, %v1096
        %v1118 = vadd.f32 %v1016, %v1099
        %v1119 = vadd.f32 %v1017, %v1102
        %v1120 = vadd.f32 %v1018, %v1105
        %v1121 = vadd.f32 %v1019, %v1108
        %v1122 = vadd.f32 %v1020, %v1111
        %v1123 = vadd.f32 %v1021, %v1114
        %s1124 = scalar_lea.vmem %s1, 24
        %v1125 = vld [vmem:[%s1124] sm:$0xf]
        %v1127 = vsel %vm625, %v584, 0
        %v1130 = vsel %vm650, %v1125, 0
        %1132 = vmatpush.msra.mxu0 0.0
        %1133 = vmatpush.msra.mxu0 0.0
        %1134 = vmatpush.msra.mxu0 0.0
        %1135 = vmatpush.msra.mxu0 0.0
        %1136 = vmatpush.msra.mxu0 0.0
        %1137 = vmatpush.msra.mxu0 0.0
        %1138 = vmatpush.msra.mxu0 0.0
        %1139 = vmatpush.msra.mxu0 0.0
        %1140 = vmatpush.msra.mxu0 0.0
        %1141 = vmatpush.msra.mxu0 0.0
        %1142 = vmatpush.msra.mxu0 0.0
        %1143 = vmatpush.msra.mxu0 0.0
        %1144 = vmatpush.msra.mxu0 0.0
        %1145 = vmatpush.msra.mxu0 0.0
        %1146 = vmatpush.msra.mxu0 0.0
        %1147 = vmatpush.msra.mxu0 %v1130
        %1148 = vmatmul.f32.gmra.mxu0 %v699
        %v1149 = vpop.f32.mrf.mxu0
        %v1150 = vadd.f32 0.0, %v1149
        %1151 = vmatmul.f32.gmra.mxu0 %v702
        %v1152 = vpop.f32.mrf.mxu0
        %v1153 = vadd.f32 0.0, %v1152
        %1154 = vmatmul.f32.gmra.mxu0 %v705
        %v1155 = vpop.f32.mrf.mxu0
        %v1156 = vadd.f32 0.0, %v1155
        %1157 = vmatmul.f32.gmra.mxu0 %v708
        %v1158 = vpop.f32.mrf.mxu0
        %v1159 = vadd.f32 0.0, %v1158
        %1160 = vmatmul.f32.gmra.mxu0 %v711
        %v1161 = vpop.f32.mrf.mxu0
        %v1162 = vadd.f32 0.0, %v1161
        %1163 = vmatmul.f32.gmra.mxu0 %v714
        %v1164 = vpop.f32.mrf.mxu0
        %v1165 = vadd.f32 0.0, %v1164
        %1166 = vmatmul.f32.gmra.mxu0 %v717
        %v1167 = vpop.f32.mrf.mxu0
        %v1168 = vadd.f32 0.0, %v1167
        %1169 = vmatmul.f32.gmra.mxu0 %v1127
        %v1170 = vpop.f32.mrf.mxu0
        %v1171 = vadd.f32 0.0, %v1170
        %1172 = vdwg.mxu0
        %v1173 = vadd.f32 %v1116, %v1150
        %v1174 = vadd.f32 %v1117, %v1153
        %v1175 = vadd.f32 %v1118, %v1156
        %v1176 = vadd.f32 %v1119, %v1159
        %v1177 = vadd.f32 %v1120, %v1162
        %v1178 = vadd.f32 %v1121, %v1165
        %v1179 = vadd.f32 %v1122, %v1168
        %v1180 = vadd.f32 %v1123, %v1171
        %s1181 = scalar_lea.vmem %s1, 28
        %v1182 = vld [vmem:[%s1181] sm:$0xf]
        %v1184 = vsel %vm625, %v595, 0
        %v1187 = vsel %vm650, %v1182, 0
        %1189 = vmatpush.msra.mxu0 0.0
        %1190 = vmatpush.msra.mxu0 0.0
        %1191 = vmatpush.msra.mxu0 0.0
        %1192 = vmatpush.msra.mxu0 0.0
        %1193 = vmatpush.msra.mxu0 0.0
        %1194 = vmatpush.msra.mxu0 0.0
        %1195 = vmatpush.msra.mxu0 0.0
        %1196 = vmatpush.msra.mxu0 0.0
        %1197 = vmatpush.msra.mxu0 0.0
        %1198 = vmatpush.msra.mxu0 0.0
        %1199 = vmatpush.msra.mxu0 0.0
        %1200 = vmatpush.msra.mxu0 0.0
        %1201 = vmatpush.msra.mxu0 0.0
        %1202 = vmatpush.msra.mxu0 0.0
        %1203 = vmatpush.msra.mxu0 0.0
        %1204 = vmatpush.msra.mxu0 %v1187
        %1205 = vmatmul.f32.gmra.mxu0 %v630
        %v1206 = vpop.f32.mrf.mxu0
        %v1207 = vadd.f32 0.0, %v1206
        %1208 = vmatmul.f32.gmra.mxu0 %v633
        %v1209 = vpop.f32.mrf.mxu0
        %v1210 = vadd.f32 0.0, %v1209
        %1211 = vmatmul.f32.gmra.mxu0 %v636
        %v1212 = vpop.f32.mrf.mxu0
        %v1213 = vadd.f32 0.0, %v1212
        %1214 = vmatmul.f32.gmra.mxu0 %v639
        %v1215 = vpop.f32.mrf.mxu0
        %v1216 = vadd.f32 0.0, %v1215
        %1217 = vmatmul.f32.gmra.mxu0 %v642
        %v1218 = vpop.f32.mrf.mxu0
        %v1219 = vadd.f32 0.0, %v1218
        %1220 = vmatmul.f32.gmra.mxu0 %v645
        %v1221 = vpop.f32.mrf.mxu0
        %v1222 = vadd.f32 0.0, %v1221
        %1223 = vmatmul.f32.gmra.mxu0 %v648
        %v1224 = vpop.f32.mrf.mxu0
        %v1225 = vadd.f32 0.0, %v1224
        %1226 = vmatmul.f32.gmra.mxu0 %v1184
        %v1227 = vpop.f32.mrf.mxu0
        %v1228 = vadd.f32 0.0, %v1227
        %1229 = vdwg.mxu0
        %v1230 = vadd.f32 %v1173, %v1207
        %v1231 = vadd.f32 %v1174, %v1210
        %v1232 = vadd.f32 %v1175, %v1213
        %v1233 = vadd.f32 %v1176, %v1216
        %v1234 = vadd.f32 %v1177, %v1219
        %v1235 = vadd.f32 %v1178, %v1222
        %v1236 = vadd.f32 %v1179, %v1225
        %v1237 = vadd.f32 %v1180, %v1228
        %v1239 = vrot.slane %v584, 1
        %v1240 = vrot.slane %v585, 1
        %v1241 = vsel %vm771, %v1239, %v1240
        %s1242 = scalar_lea.vmem %s1, 32
        %v1243 = vld [vmem:[%s1242] sm:$0xf]
        %v1244 = vsel %vm625, %v1241, 0
        %v1247 = vsel %vm650, %v1243, 0
        %1249 = vmatpush.msra.mxu0 0.0
        %1250 = vmatpush.msra.mxu0 0.0
        %1251 = vmatpush.msra.mxu0 0.0
        %1252 = vmatpush.msra.mxu0 0.0
        %1253 = vmatpush.msra.mxu0 0.0
        %1254 = vmatpush.msra.mxu0 0.0
        %1255 = vmatpush.msra.mxu0 0.0
        %1256 = vmatpush.msra.mxu0 0.0
        %1257 = vmatpush.msra.mxu0 0.0
        %1258 = vmatpush.msra.mxu0 0.0
        %1259 = vmatpush.msra.mxu0 0.0
        %1260 = vmatpush.msra.mxu0 0.0
        %1261 = vmatpush.msra.mxu0 0.0
        %1262 = vmatpush.msra.mxu0 0.0
        %1263 = vmatpush.msra.mxu0 0.0
        %1264 = vmatpush.msra.mxu0 %v1247
        %1265 = vmatmul.f32.gmra.mxu0 %v800
        %v1266 = vpop.f32.mrf.mxu0
        %v1267 = vadd.f32 0.0, %v1266
        %1268 = vmatmul.f32.gmra.mxu0 %v802
        %v1269 = vpop.f32.mrf.mxu0
        %v1270 = vadd.f32 0.0, %v1269
        %1271 = vmatmul.f32.gmra.mxu0 %v804
        %v1272 = vpop.f32.mrf.mxu0
        %v1273 = vadd.f32 0.0, %v1272
        %1274 = vmatmul.f32.gmra.mxu0 %v806
        %v1275 = vpop.f32.mrf.mxu0
        %v1276 = vadd.f32 0.0, %v1275
        %1277 = vmatmul.f32.gmra.mxu0 %v808
        %v1278 = vpop.f32.mrf.mxu0
        %v1279 = vadd.f32 0.0, %v1278
        %1280 = vmatmul.f32.gmra.mxu0 %v810
        %v1281 = vpop.f32.mrf.mxu0
        %v1282 = vadd.f32 0.0, %v1281
        %1283 = vmatmul.f32.gmra.mxu0 %v812
        %v1284 = vpop.f32.mrf.mxu0
        %v1285 = vadd.f32 0.0, %v1284
        %1286 = vmatmul.f32.gmra.mxu0 %v1244
        %v1287 = vpop.f32.mrf.mxu0
        %v1288 = vadd.f32 0.0, %v1287
        %1289 = vdwg.mxu0
        %v1290 = vadd.f32 %v1230, %v1267
        %v1291 = vadd.f32 %v1231, %v1270
        %v1292 = vadd.f32 %v1232, %v1273
        %v1293 = vadd.f32 %v1233, %v1276
        %v1294 = vadd.f32 %v1234, %v1279
        %v1295 = vadd.f32 %v1235, %v1282
        %v1296 = vadd.f32 %v1236, %v1285
        %v1297 = vadd.f32 %v1237, %v1288
        %vm1298 = vcmask 64512
        %1299 = vst.msk [vmem:[%s562] sm:$0xff] %vm1298, %v1290
        %1300 = vst.msk [vmem:[%s562 + $0x8] sm:$0xff] %vm1298, %v1291
        %1301 = vst.msk [vmem:[%s562 + $0x10] sm:$0xff] %vm1298, %v1292
        %1302 = vst.msk [vmem:[%s562 + $0x18] sm:$0xff] %vm1298, %v1293
        %1303 = vst.msk [vmem:[%s562 + $0x20] sm:$0xff] %vm1298, %v1294
        %1304 = vst.msk [vmem:[%s562 + $0x28] sm:$0xff] %vm1298, %v1295
        %1305 = vst.msk [vmem:[%s562 + $0x30] sm:$0xff] %vm1298, %v1296
        %1306 = vst.msk [vmem:[%s562 + $0x38] sm:$0xff] %vm1298, %v1297
        %v1307 = vsel %vm1298, %v1290, 0.0
        %v1308 = vsel %vm1298, %v1291, 0.0
        %v1309 = vadd.f32 %v1307, %v1308
        %v1310 = vsel %vm1298, %v1292, 0.0
        %v1311 = vadd.f32 %v1309, %v1310
        %v1312 = vsel %vm1298, %v1293, 0.0
        %v1313 = vadd.f32 %v1311, %v1312
        %v1314 = vsel %vm1298, %v1294, 0.0
        %v1315 = vadd.f32 %v1313, %v1314
        %v1316 = vsel %vm1298, %v1295, 0.0
        %v1317 = vadd.f32 %v1315, %v1316
        %v1318 = vsel %vm1298, %v1296, 0.0
        %v1319 = vadd.f32 %v1317, %v1318
        %v1320 = vsel %vm1298, %v1297, 0.0
        %v1321 = vadd.f32 %v1319, %v1320
        %v1322 = vrot.slane %v1321, 4
        %v1323 = vadd.f32 %v1321, %v1322
        %v1324 = vrot.slane %v1323, 2
        %v1325 = vadd.f32 %v1323, %v1324
        %v1326 = vrot.slane %v1325, 1
        %v1327 = vadd.f32 %v1325, %v1326
        %vm1328 = vcmask 57344
        %1329 = vst.msk [vmem:[%s557] sm:$0x1] %vm1328, %v1327
        %v1330 = vmul.f32 %v1290, %v1290
        %v1331 = vmul.f32 %v1291, %v1291
        %v1332 = vmul.f32 %v1292, %v1292
        %v1333 = vmul.f32 %v1293, %v1293
        %v1334 = vmul.f32 %v1294, %v1294
        %v1335 = vmul.f32 %v1295, %v1295
        %v1336 = vmul.f32 %v1296, %v1296
        %v1337 = vmul.f32 %v1297, %v1297
        %v1338 = vsel %vm1298, %v1330, 0.0
        %v1339 = vsel %vm1298, %v1331, 0.0
        %v1340 = vadd.f32 %v1338, %v1339
        %v1341 = vsel %vm1298, %v1332, 0.0
        %v1342 = vadd.f32 %v1340, %v1341
        %v1343 = vsel %vm1298, %v1333, 0.0
        %v1344 = vadd.f32 %v1342, %v1343
        %v1345 = vsel %vm1298, %v1334, 0.0
        %v1346 = vadd.f32 %v1344, %v1345
        %v1347 = vsel %vm1298, %v1335, 0.0
        %v1348 = vadd.f32 %v1346, %v1347
        %v1349 = vsel %vm1298, %v1336, 0.0
        %v1350 = vadd.f32 %v1348, %v1349
        %v1351 = vsel %vm1298, %v1337, 0.0
        %v1352 = vadd.f32 %v1350, %v1351
        %v1353 = vrot.slane %v1352, 4
        %v1354 = vadd.f32 %v1352, %v1353
        %v1355 = vrot.slane %v1354, 2
        %v1356 = vadd.f32 %v1354, %v1355
        %v1357 = vrot.slane %v1356, 1
        %v1358 = vadd.f32 %v1356, %v1357
        %1359 = vst.msk [vmem:[%s557 + $0x1] sm:$0x1] %vm1328, %v1358
        %v1360 = vld [vmem:[%s2] sm:$0xf]
        %v1362 = vsel %vm650, %v1360, 0
        %1364 = vmatpush.msra.mxu0 0.0
        %1365 = vmatpush.msra.mxu0 0.0
        %1366 = vmatpush.msra.mxu0 0.0
        %1367 = vmatpush.msra.mxu0 0.0
        %1368 = vmatpush.msra.mxu0 0.0
        %1369 = vmatpush.msra.mxu0 0.0
        %1370 = vmatpush.msra.mxu0 0.0
        %1371 = vmatpush.msra.mxu0 0.0
        %1372 = vmatpush.msra.mxu0 0.0
        %1373 = vmatpush.msra.mxu0 0.0
        %1374 = vmatpush.msra.mxu0 0.0
        %1375 = vmatpush.msra.mxu0 0.0
        %1376 = vmatpush.msra.mxu0 0.0
        %1377 = vmatpush.msra.mxu0 0.0
        %1378 = vmatpush.msra.mxu0 0.0
        %1379 = vmatpush.msra.mxu0 %v1362
        %1380 = vmatmul.f32.gmra.mxu0 %v947
        %v1381 = vpop.f32.mrf.mxu0
        %v1382 = vadd.f32 0.0, %v1381
        %1383 = vmatmul.f32.gmra.mxu0 %v950
        %v1384 = vpop.f32.mrf.mxu0
        %v1385 = vadd.f32 0.0, %v1384
        %1386 = vmatmul.f32.gmra.mxu0 %v953
        %v1387 = vpop.f32.mrf.mxu0
        %v1388 = vadd.f32 0.0, %v1387
        %1389 = vmatmul.f32.gmra.mxu0 %v956
        %v1390 = vpop.f32.mrf.mxu0
        %v1391 = vadd.f32 0.0, %v1390
        %1392 = vmatmul.f32.gmra.mxu0 %v959
        %v1393 = vpop.f32.mrf.mxu0
        %v1394 = vadd.f32 0.0, %v1393
        %1395 = vmatmul.f32.gmra.mxu0 %v962
        %v1396 = vpop.f32.mrf.mxu0
        %v1397 = vadd.f32 0.0, %v1396
        %1398 = vmatmul.f32.gmra.mxu0 %v965
        %v1399 = vpop.f32.mrf.mxu0
        %v1400 = vadd.f32 0.0, %v1399
        %1401 = vmatmul.f32.gmra.mxu0 %v968
        %v1402 = vpop.f32.mrf.mxu0
        %v1403 = vadd.f32 0.0, %v1402
        %1404 = vdwg.mxu0
        %v1405 = vsel %vm1298, %v1382, 0.0
        %v1406 = vsel %vm1298, %v1385, 0.0
        %v1407 = vadd.f32 %v1405, %v1406
        %v1408 = vsel %vm1298, %v1388, 0.0
        %v1409 = vadd.f32 %v1407, %v1408
        %v1410 = vsel %vm1298, %v1391, 0.0
        %v1411 = vadd.f32 %v1409, %v1410
        %v1412 = vsel %vm1298, %v1394, 0.0
        %v1413 = vadd.f32 %v1411, %v1412
        %v1414 = vsel %vm1298, %v1397, 0.0
        %v1415 = vadd.f32 %v1413, %v1414
        %v1416 = vsel %vm1298, %v1400, 0.0
        %v1417 = vadd.f32 %v1415, %v1416
        %v1418 = vsel %vm1298, %v1403, 0.0
        %v1419 = vadd.f32 %v1417, %v1418
        %v1420 = vrot.slane %v1419, 4
        %v1421 = vadd.f32 %v1419, %v1420
        %v1422 = vrot.slane %v1421, 2
        %v1423 = vadd.f32 %v1421, %v1422
        %v1424 = vrot.slane %v1423, 1
        %v1425 = vadd.f32 %v1423, %v1424
        %1426 = vst.msk [vmem:[%s557 + $0x2] sm:$0x1] %vm1328, %v1425
        %v1427 = vmul.f32 %v1382, %v1382
        %v1428 = vmul.f32 %v1385, %v1385
        %v1429 = vmul.f32 %v1388, %v1388
        %v1430 = vmul.f32 %v1391, %v1391
        %v1431 = vmul.f32 %v1394, %v1394
        %v1432 = vmul.f32 %v1397, %v1397
        %v1433 = vmul.f32 %v1400, %v1400
        %v1434 = vmul.f32 %v1403, %v1403
        %v1435 = vsel %vm1298, %v1427, 0.0
        %v1436 = vsel %vm1298, %v1428, 0.0
        %v1437 = vadd.f32 %v1435, %v1436
        %v1438 = vsel %vm1298, %v1429, 0.0
        %v1439 = vadd.f32 %v1437, %v1438
        %v1440 = vsel %vm1298, %v1430, 0.0
        %v1441 = vadd.f32 %v1439, %v1440
        %v1442 = vsel %vm1298, %v1431, 0.0
        %v1443 = vadd.f32 %v1441, %v1442
        %v1444 = vsel %vm1298, %v1432, 0.0
        %v1445 = vadd.f32 %v1443, %v1444
        %v1446 = vsel %vm1298, %v1433, 0.0
        %v1447 = vadd.f32 %v1445, %v1446
        %v1448 = vsel %vm1298, %v1434, 0.0
        %v1449 = vadd.f32 %v1447, %v1448
        %v1450 = vrot.slane %v1449, 4
        %v1451 = vadd.f32 %v1449, %v1450
        %v1452 = vrot.slane %v1451, 2
        %v1453 = vadd.f32 %v1451, %v1452
        %v1454 = vrot.slane %v1453, 1
        %v1455 = vadd.f32 %v1453, %v1454
        %1456 = vst.msk [vmem:[%s557 + $0x3] sm:$0x1] %vm1328, %v1455
        %1457 = vst.msk [vmem:[%s567] sm:$0xff] %vm1298, %v1382
        %1458 = vst.msk [vmem:[%s567 + $0x8] sm:$0xff] %vm1298, %v1385
        %1459 = vst.msk [vmem:[%s567 + $0x10] sm:$0xff] %vm1298, %v1388
        %1460 = vst.msk [vmem:[%s567 + $0x18] sm:$0xff] %vm1298, %v1391
        %1461 = vst.msk [vmem:[%s567 + $0x20] sm:$0xff] %vm1298, %v1394
        %1462 = vst.msk [vmem:[%s567 + $0x28] sm:$0xff] %vm1298, %v1397
        %1463 = vst.msk [vmem:[%s567 + $0x30] sm:$0xff] %vm1298, %v1400
        %1464 = vst.msk [vmem:[%s567 + $0x38] sm:$0xff] %vm1298, %v1403
        %p1465 = scmp.lt.s32.totalorder %s20, 1
        %s1466 = scalar_select %p1465, %s20, 1
        %s1467 = smul.addr %s1466, 8
        %s1468 = smul.addr %s1467, 8
        %s1469 = scalar_lea.vmem %s3, %s1468
        %p1470 = scmp.lt.s32.totalorder %s20, 1
        %s1471 = scalar_select %p1470, %s20, 1
        %s1472 = smul.addr %s1471, 8
        %s1473 = smul.addr %s1472, 8
        %s1474 = scalar_lea.vmem %s4, %s1473
        %s1475 = sand.u32 %s148, 1
        %s1476 = scalar_lea.sflag [#allocation4], %s1475
        %s1477 = sand.u32 %s148, 1
        %s1478 = smul.addr %s1477, 4
        %s1479 = scalar_lea.vmem [#allocation3], %s1478
        // Predicated region
        $region71: #{tpu_custom_call.1} parent=65 // pred_check
          %p1480 = pneg %p106
        $region72: #{tpu_custom_call.1} parent=65 // pred_check_branch
          %1482 = sbr.rel (%p1480) target = $region74
        $region73: #{tpu_custom_call.1} parent=65 // pred_region
          _
        $region74: #{tpu_custom_call.1} parent=65 // pred_fallthru
          _
        // Predicated region
        $region75: #{tpu_custom_call.1} parent=65 // pred_check
          %p1483 = pneg %p132
        $region76: #{tpu_custom_call.1} parent=65 // pred_check_branch
          %1485 = sbr.rel (%p1483) target = $region78
        $region77: #{tpu_custom_call.1} parent=65 // pred_region
          _
        $region78: #{tpu_custom_call.1} parent=65 // pred_fallthru
          _
        // Predicated region
        $region79: #{tpu_custom_call.1} parent=65 // pred_check
          %p1486 = pneg %p158
        $region80: #{tpu_custom_call.1} parent=65 // pred_check_branch
          %1488 = sbr.rel (%p1486) target = $region82
        $region81: #{tpu_custom_call.1} parent=65 // pred_region
          %1490 = vsyncadd %s1476, 0
          %s1491 = smul.addr %s20, 4
          %s1492 = scalar_lea.hbm %s5, %s1491
          %s1494 = sshll.u32 %s1479, 4
          %s1495 = int_to_ptr.vmem [resolvable:$true] %s1494
          %s1496 = sshll.u32 %s1492, 4
          %s1497 = int_to_ptr.hbm [resolvable:$true] %s1496
          %1499 = dma.vmem_to_hbm [thread:$0]  %s1495, 64, %s1497, %s1476
        $region82: #{tpu_custom_call.1} parent=65 // pred_fallthru
          _
      $region66: #{tpu_custom_call.1} parent=5 // pred_fallthru
        _
      %p1500 = scmp.le.s32.totalorder 2, %s15
      // Predicated region
      $region83: #{tpu_custom_call.1} parent=5 // pred_check
        %p1501 = pneg %p1500
      $region84: #{tpu_custom_call.1} parent=5 // pred_check_branch
        %1503 = sbr.rel (%p1501) target = $region86
      $region85: #{tpu_custom_call.1} parent=5 // pred_region
        %s1504 = ssub.s32 %s15, 2
        // Predicated region
        $region87: #{tpu_custom_call.1} parent=85 // pred_check
          %p1505 = pneg %p112
        $region88: #{tpu_custom_call.1} parent=85 // pred_check_branch
          %1507 = sbr.rel (%p1505) target = $region90
        $region89: #{tpu_custom_call.1} parent=85 // pred_region
          %p1508 = scmp.lt.s32.totalorder %s21, 1
          %s1509 = scalar_select %p1508, %s21, 1
          %s1510 = smul.addr %s1509, 8
          %s1511 = smul.addr %s1510, 8
          %s1512 = scalar_lea.vmem %s3, %s1511
        $region90: #{tpu_custom_call.1} parent=85 // pred_fallthru
          _
        // Predicated region
        $region91: #{tpu_custom_call.1} parent=85 // pred_check
          %p1513 = pneg %p138
        $region92: #{tpu_custom_call.1} parent=85 // pred_check_branch
          %1515 = sbr.rel (%p1513) target = $region94
        $region93: #{tpu_custom_call.1} parent=85 // pred_region
          %p1516 = scmp.lt.s32.totalorder %s21, 1
          %s1517 = scalar_select %p1516, %s21, 1
          %s1518 = smul.addr %s1517, 8
          %s1519 = smul.addr %s1518, 8
          %s1520 = scalar_lea.vmem %s4, %s1519
        $region94: #{tpu_custom_call.1} parent=85 // pred_fallthru
          _
        // Predicated region
        $region95: #{tpu_custom_call.1} parent=85 // pred_check
          %p1521 = pneg %p164
        $region96: #{tpu_custom_call.1} parent=85 // pred_check_branch
          %1523 = sbr.rel (%p1521) target = $region98
        $region97: #{tpu_custom_call.1} parent=85 // pred_region
          %s1524 = sand.u32 %s149, 1
          %s1525 = scalar_lea.sflag [#allocation4], %s1524
          %s1526 = sand.u32 %s149, 1
          %s1527 = smul.addr %s1526, 4
          %s1528 = scalar_lea.vmem [#allocation3], %s1527
          %1530 = dma.done %s1525, 64
        $region98: #{tpu_custom_call.1} parent=85 // pred_fallthru
          _
      $region86: #{tpu_custom_call.1} parent=5 // pred_fallthru
        _
    $region6: #{tpu_custom_call.1} parent=1 // loop_footer
      %s19 = sadd.s32 1, %s15
    $region7: #{tpu_custom_call.1} parent=1 // loop_footer_branch
      %14 = sbr.rel target = $region3
    $region8: #{tpu_custom_call.1} parent=1 // loop_exit
      _
    %1531 = vsyncpa [#allocation4], 1
    %s1532 = scalar_lea.sflag [#allocation4], 1
    %1533 = vsyncpa %s1532, 1

</llo_original>
